<compile_context>
chip_gen: v6e
topology: v6e:2x2x1
jax: 0.10.0
libtpu: 0.0.40
codegen_flags: <defaults>
</compile_context>

<pallas_src>
import jax
import jax.numpy as jnp
from jax import lax
from jax.experimental import pallas as pl
from jax.experimental.pallas import tpu as pltpu
import numpy as np

NEG_SLOPE = 0.01  # nn.LeakyReLU default negative_slope


def _round_up(x, m):
    return ((x + m - 1) // m) * m


def _pick_row_tile(H, Wp, C, budget_bytes=16 * 1024 * 1024):
    """Largest row tile TH (dividing H) whose per-step VMEM footprint fits.

    Rough, conservative estimate: ~96*C bytes per pixel covers the 2x-buffered
    f32 input/output blocks, the f32 y1 scratch, and the f32/bf16 im2col
    intermediates. The 16 MiB default budget leaves headroom on every
    generation (v7x has 64 MiB physical VMEM, v5e/v6e 128 MiB).
    """
    per_row = max(1, 96 * C * Wp)
    cap = max(1, budget_bytes // per_row)
    th = min(H, cap)
    while H % th:
        th -= 1
    return th


def _dark_res_kernel(x_ref, halo_ref, w1_ref, s1_ref, b1_ref,
                     w2_ref, s2_ref, b2_ref, o_ref, y1_ref):
    # x_ref:    (1, TH, Wp, C)  f32   tile rows, W zero-padded in the wrapper
    # halo_ref: (1, 2,  Wp, C)  f32   row above / row below this tile
    # w1_ref:   (C, Cr)         bf16  1x1 conv weights
    # w2_ref:   (9*Cr, C)       bf16  3x3 conv weights, (kh, kw, cin) flattened
    # s*/b*:    (1, Cr)/(1, C)  f32   folded BatchNorm scale & bias
    # o_ref:    (1, TH, W, C)   f32
    # y1_ref:   (TH+2, Wp, Cr)  f32   scratch (fully rewritten; never memset)
    _, TH, W, C = o_ref.shape
    Wp = x_ref.shape[2]
    Cr = w1_ref.shape[1]

    t = pl.program_id(1)
    n_t = pl.num_programs(1)

    # ---- assemble the row-extended tile (TH+2, Wp, C), bf16 for the MXU ----
    halo = halo_ref[0].astype(jnp.bfloat16)                 # (2, Wp, C)
    x_bf = x_ref[0].astype(jnp.bfloat16)                    # (TH, Wp, C)
    x_ext = jnp.concatenate([halo[0:1], x_bf, halo[1:2]], axis=0)

    # ---- layer1: 1x1 conv (channel matmul) + folded BN + LeakyReLU (f32) ----
    y1 = jnp.dot(x_ext.reshape((TH + 2) * Wp, C), w1_ref[...],
                 preferred_element_type=jnp.float32)        # ((TH+2)*Wp, Cr)
    y1 = y1 * s1_ref[...] + b1_ref[...]
    y1 = jnp.where(y1 > 0, y1, NEG_SLOPE * y1)
    y1 = y1.reshape(TH + 2, Wp, Cr)

    # Zero conv2's padding ring: the padded W columns always; the first/last
    # extended row only at the image boundary (elsewhere halo rows are real).
    row = lax.broadcasted_iota(jnp.int32, (TH + 2, Wp, Cr), 0)
    col = lax.broadcasted_iota(jnp.int32, (TH + 2, Wp, Cr), 1)
    valid = (col >= 1) & (col <= W)
    valid &= jnp.logical_or(t > 0, row >= 1)
    valid &= jnp.logical_or(t < n_t - 1, row <= TH)
    y1_ref[...] = jnp.where(valid, y1, 0.0)

    # ---- layer2: 3x3 conv (pad=1) as ONE im2col matmul with K = 9*Cr ----
    pieces = [y1_ref[di:di + TH, dj:dj + W, :]
              for di in range(3) for dj in range(3)]         # (TH, W, Cr) each
    patch = jnp.concatenate(pieces, axis=-1)                 # (TH, W, 9*Cr)
    patch = patch.reshape(TH * W, 9 * Cr).astype(jnp.bfloat16)
    y2 = jnp.dot(patch, w2_ref[...],
                 preferred_element_type=jnp.float32)         # (TH*W, C)
    y2 = y2 * s2_ref[...] + b2_ref[...]
    y2 = jnp.where(y2 > 0, y2, NEG_SLOPE * y2)

    # ---- residual add in f32: re-read the resident input tile (no pad cols) ----
    res = x_ref[0, :, 1:W + 1, :].reshape(TH * W, C)
    o_ref[0] = (y2 + res).reshape(TH, W, C).astype(o_ref.dtype)


def dark_residual_block(x_nchw, params, row_tile=None):
    """x_nchw: (N, C, H, W) float32. Returns (N, C, H, W)."""
    w1, s1, b1, w2p, s2, b2 = params
    N, C, H, W = x_nchw.shape
    Cr = w1.shape[1]
    assert W % 8 == 0, "W must be a multiple of 8 (lane/sublane-friendly reshapes)"
    # TODO(synk): block channels (last dim >= 128) for a lane-dense output
    # store once C is large; the demo C=4 keeps blocks full-channel.

    x = jnp.transpose(x_nchw, (0, 2, 3, 1))                  # NHWC

    # Zero-pad W (1 left, >=1 right, rounded so Wp is sublane-tile friendly for
    # bf16) and H by 1 row for building the per-tile halo rows.
    Wp = _round_up(W + 2, 16)
    TH = row_tile if row_tile is not None else _pick_row_tile(H, Wp, C)
    assert H % TH == 0, "row_tile must divide H"
    n_th = H // TH

    xp = jnp.pad(x, ((0, 0), (1, 1), (1, Wp - W - 1), (0, 0)))   # (N, H+2, Wp, C)
    x_main = xp[:, 1:H + 1]                                      # (N, H,  Wp, C)
    halo_top = xp[:, 0:H:TH]                                     # row above tile t
    halo_bot = xp[:, TH + 1:H + 2:TH]                            # row below tile t
    halo = jnp.stack([halo_top, halo_bot], axis=2)               # (N, n_th, 2, Wp, C)
    halo = halo.reshape(N, 2 * n_th, Wp, C)

    out = pl.pallas_call(
        _dark_res_kernel,
        out_shape=jax.ShapeDtypeStruct((N, H, W, C), x.dtype),
        grid_spec=pltpu.PrefetchScalarGridSpec(
            num_scalar_prefetch=0,
            grid=(N, n_th),
            in_specs=[
                pl.BlockSpec((1, TH, Wp, C), lambda n, t: (n, t, 0, 0)),
                pl.BlockSpec((1, 2, Wp, C), lambda n, t: (n, t, 0, 0)),
                pl.BlockSpec((C, Cr), lambda n, t: (0, 0)),
                pl.BlockSpec((1, Cr), lambda n, t: (0, 0)),
                pl.BlockSpec((1, Cr), lambda n, t: (0, 0)),
                pl.BlockSpec((9 * Cr, C), lambda n, t: (0, 0)),
                pl.BlockSpec((1, C), lambda n, t: (0, 0)),
                pl.BlockSpec((1, C), lambda n, t: (0, 0)),
            ],
            out_specs=pl.BlockSpec((1, TH, W, C), lambda n, t: (n, t, 0, 0)),
            scratch_shapes=[pltpu.VMEM((TH + 2, Wp, Cr), jnp.float32)],
        ),
        compiler_params=pltpu.CompilerParams(
            dimension_semantics=("parallel", "parallel"),
            vmem_limit_bytes=48 * 1024 * 1024,
        ),
    )(x_main, halo, w1, s1, b1, w2p, s2, b2)

    return jnp.transpose(out, (0, 3, 1, 2))                  # back to NCHW


def pack_params(w1_t, w2_t, s1, b1, s2, b2):
    """Torch-layout conv weights -> kernel layout, bf16 for the MXU."""
    Cr, C = w1_t.shape[0], w1_t.shape[1]
    w1 = jnp.transpose(w1_t[:, :, 0, 0], (1, 0)).astype(jnp.bfloat16)     # (C, Cr)
    # (Cout, Cin, kh, kw) -> (kh, kw, Cin, Cout) -> ((kh*3+kw)*Cin+cin, Cout)
    w2p = jnp.transpose(w2_t, (2, 3, 1, 0)).reshape(9 * Cr, C).astype(jnp.bfloat16)
    return w1, s1, b1, w2p, s2, b2


def init_params(key, in_channels):
    """Deterministic synthetic parameters (PyTorch layouts) + folded BN."""
    Cr = in_channels // 2
    k = jax.random.split(key, 10)
    w1_t = 0.1 * jax.random.normal(k[0], (Cr, in_channels, 1, 1), jnp.float32)
    w2_t = 0.1 * jax.random.normal(k[1], (in_channels, Cr, 3, 3), jnp.float32)
    eps = 1e-5
    g1 = 1.0 + 0.1 * jax.random.normal(k[2], (Cr,), jnp.float32)
    be1 = 0.1 * jax.random.normal(k[3], (Cr,), jnp.float32)
    m1 = 0.1 * jax.random.normal(k[4], (Cr,), jnp.float32)
    v1 = jnp.abs(jax.random.normal(k[5], (Cr,), jnp.float32)) + 0.5
    g2 = 1.0 + 0.1 * jax.random.normal(k[6], (in_channels,), jnp.float32)
    be2 = 0.1 * jax.random.normal(k[7], (in_channels,), jnp.float32)
    m2 = 0.1 * jax.random.normal(k[8], (in_channels,), jnp.float32)
    v2 = jnp.abs(jax.random.normal(k[9], (in_channels,), jnp.float32)) + 0.5

    s1 = (g1 / jnp.sqrt(v1 + eps)).reshape(1, Cr)
    b1 = (be1 - m1 * (g1 / jnp.sqrt(v1 + eps))).reshape(1, Cr)
    s2 = (g2 / jnp.sqrt(v2 + eps)).reshape(1, in_channels)
    b2 = (be2 - m2 * (g2 / jnp.sqrt(v2 + eps))).reshape(1, in_channels)
    return w1_t, w2_t, s1, b1, s2, b2


def ref_forward(x_nchw, w1_t, s1, b1, w2_t, s2, b2):
    """Pure-JAX f32 reference in NCHW matching the PyTorch forward (eval BN)."""
    dn = ('NCHW', 'OIHW', 'NCHW')
    y1 = lax.conv_general_dilated(x_nchw, w1_t, (1, 1), 'VALID',
                                  dimension_numbers=dn)
    y1 = y1 * s1.reshape(1, -1, 1, 1) + b1.reshape(1, -1, 1, 1)
    y1 = jnp.where(y1 > 0, y1, NEG_SLOPE * y1)
    y2 = lax.conv_general_dilated(y1, w2_t, (1, 1), ((1, 1), (1, 1)),
                                  dimension_numbers=dn)
    y2 = y2 * s2.reshape(1, -1, 1, 1) + b2.reshape(1, -1, 1, 1)
    y2 = jnp.where(y2 > 0, y2, NEG_SLOPE * y2)
    return y2 + x_nchw


if __name__ == "__main__":
    key = jax.random.PRNGKey(0)
    kx, kp = jax.random.split(key)

    N, C, H, W = 2, 4, 16, 16
    x = jax.random.normal(kx, (N, C, H, W), jnp.float32)
    w1_t, w2_t, s1, b1, s2, b2 = init_params(kp, C)
    params = pack_params(w1_t, w2_t, s1, b1, s2, b2)

    # row_tile=8 -> grid (2, 2): exercises the multi-tile halo path.
    out = dark_residual_block(x, params, row_tile=8)
    out = jax.block_until_ready(out)

    ref = ref_forward(x, w1_t, s1, b1, w2_t, s2, b2)
    # bf16 MXU inputs (f32 accumulation/epilogue) -> loosened tolerance.
    np.testing.assert_allclose(np.asarray(out), np.asarray(ref),
                               atol=2e-2, rtol=2e-2)
    print("KERNEL_OK")
</pallas_src>

<mosaic_0001>
module attributes {stable_mosaic.version = 11 : i64} {
  func.func @_dark_res_kernel(%arg0: i32, %arg1: i32, %arg2: memref<1x8x32x4xf32, #tpu.memory_space<vmem>>, %arg3: memref<1x2x32x4xf32, #tpu.memory_space<vmem>>, %arg4: memref<4x2xbf16, #tpu.memory_space<vmem>>, %arg5: memref<1x2xf32, #tpu.memory_space<vmem>>, %arg6: memref<1x2xf32, #tpu.memory_space<vmem>>, %arg7: memref<18x4xbf16, #tpu.memory_space<vmem>>, %arg8: memref<1x4xf32, #tpu.memory_space<vmem>>, %arg9: memref<1x4xf32, #tpu.memory_space<vmem>>, %arg10: memref<1x8x16x4xf32, #tpu.memory_space<vmem>>, %arg11: memref<10x32x2xf32, #tpu.memory_space<vmem>>) attributes {dimension_semantics = [#tpu.dimension_semantics<parallel>, #tpu.dimension_semantics<parallel>], iteration_bounds = array<i64: 2, 2>, scalar_prefetch = 0 : i64, scratch_operands = 1 : i64, tpu.core_type = #tpu.core_type<tc>, window_params = [{transform_indices = @transform_0, window_bounds = array<i64: 1, 8, 32, 4>}, {transform_indices = @transform_1, window_bounds = array<i64: 1, 2, 32, 4>}, {pipeline_mode = #tpu.pipeline_mode<synchronous>, transform_indices = @transform_2, window_bounds = array<i64: 4, 2>}, {pipeline_mode = #tpu.pipeline_mode<synchronous>, transform_indices = @transform_3, window_bounds = array<i64: 1, 2>}, {pipeline_mode = #tpu.pipeline_mode<synchronous>, transform_indices = @transform_4, window_bounds = array<i64: 1, 2>}, {pipeline_mode = #tpu.pipeline_mode<synchronous>, transform_indices = @transform_5, window_bounds = array<i64: 18, 4>}, {pipeline_mode = #tpu.pipeline_mode<synchronous>, transform_indices = @transform_6, window_bounds = array<i64: 1, 4>}, {pipeline_mode = #tpu.pipeline_mode<synchronous>, transform_indices = @transform_7, window_bounds = array<i64: 1, 4>}, {transform_indices = @transform_8, window_bounds = array<i64: 1, 8, 16, 4>}]} {
    %c0 = arith.constant 0 : index
    %c0_0 = arith.constant 0 : index
    %c0_1 = arith.constant 0 : index
    %c0_2 = arith.constant 0 : index
    %0 = vector.load %arg3[%c0, %c0_0, %c0_1, %c0_2] : memref<1x2x32x4xf32, #tpu.memory_space<vmem>>, vector<1x2x32x4xf32>
    %1 = vector.shape_cast %0 : vector<1x2x32x4xf32> to vector<2x32x4xf32>
    %2 = arith.truncf %1 : vector<2x32x4xf32> to vector<2x32x4xbf16>
    %c0_3 = arith.constant 0 : index
    %c0_4 = arith.constant 0 : index
    %c0_5 = arith.constant 0 : index
    %c0_6 = arith.constant 0 : index
    %3 = vector.load %arg2[%c0_3, %c0_4, %c0_5, %c0_6] : memref<1x8x32x4xf32, #tpu.memory_space<vmem>>, vector<1x8x32x4xf32>
    %4 = vector.shape_cast %3 : vector<1x8x32x4xf32> to vector<8x32x4xf32>
    %5 = arith.truncf %4 : vector<8x32x4xf32> to vector<8x32x4xbf16>
    %6 = vector.extract_strided_slice %2 {offsets = [0, 0, 0], sizes = [1, 32, 4], strides = [1, 1, 1]} : vector<2x32x4xbf16> to vector<1x32x4xbf16>
    %7 = vector.extract_strided_slice %2 {offsets = [1, 0, 0], sizes = [1, 32, 4], strides = [1, 1, 1]} : vector<2x32x4xbf16> to vector<1x32x4xbf16>
    %8 = tpu.concatenate %6, %5, %7 in 0 : vector<1x32x4xbf16>, vector<8x32x4xbf16>, vector<1x32x4xbf16> -> vector<10x32x4xbf16>
    %9 = vector.shape_cast %8 : vector<10x32x4xbf16> to vector<320x4xbf16>
    %c0_7 = arith.constant 0 : index
    %c0_8 = arith.constant 0 : index
    %10 = vector.load %arg4[%c0_7, %c0_8] : memref<4x2xbf16, #tpu.memory_space<vmem>>, vector<4x2xbf16>
    %cst = arith.constant dense<0.000000e+00> : vector<320x2xf32>
    %11 = tpu.matmul %9, %10, %cst {dimension_numbers = #tpu.dot_dimension_numbers<[1], [0], [0], [1], [0, 0, 1, 1], [], []>} : vector<320x4xbf16>, vector<4x2xbf16>, vector<320x2xf32> -> vector<320x2xf32>
    %c0_9 = arith.constant 0 : index
    %c0_10 = arith.constant 0 : index
    %12 = vector.load %arg5[%c0_9, %c0_10] : memref<1x2xf32, #tpu.memory_space<vmem>>, vector<1x2xf32>
    %13 = vector.broadcast %12 : vector<1x2xf32> to vector<320x2xf32>
    %14 = arith.mulf %11, %13 : vector<320x2xf32>
    %c0_11 = arith.constant 0 : index
    %c0_12 = arith.constant 0 : index
    %15 = vector.load %arg6[%c0_11, %c0_12] : memref<1x2xf32, #tpu.memory_space<vmem>>, vector<1x2xf32>
    %16 = vector.broadcast %15 : vector<1x2xf32> to vector<320x2xf32>
    %17 = arith.addf %14, %16 : vector<320x2xf32>
    %cst_13 = arith.constant 0.000000e+00 : f32
    %18 = vector.broadcast %cst_13 : f32 to vector<320x2xf32>
    %19 = arith.cmpf ogt, %17, %18 : vector<320x2xf32>
    %cst_14 = arith.constant 0.00999999977 : f32
    %20 = vector.broadcast %cst_14 : f32 to vector<320x2xf32>
    %21 = arith.mulf %20, %17 : vector<320x2xf32>
    %22 = arith.select %19, %17, %21 : vector<320x2xi1>, vector<320x2xf32>
    %23 = vector.shape_cast %22 : vector<320x2xf32> to vector<10x32x2xf32>
    %24 = tpu.iota {dimensions = array<i32: 0>} : vector<10x32x2xi32>
    %25 = tpu.iota {dimensions = array<i32: 1>} : vector<10x32x2xi32>
    %c1_i32 = arith.constant 1 : i32
    %26 = vector.broadcast %c1_i32 : i32 to vector<10x32x2xi32>
    %27 = arith.cmpi sge, %25, %26 : vector<10x32x2xi32>
    %c16_i32 = arith.constant 16 : i32
    %28 = vector.broadcast %c16_i32 : i32 to vector<10x32x2xi32>
    %29 = arith.cmpi sle, %25, %28 : vector<10x32x2xi32>
    %30 = arith.andi %27, %29 : vector<10x32x2xi1>
    %c0_i32 = arith.constant 0 : i32
    %31 = arith.cmpi sgt, %arg1, %c0_i32 : i32
    %c1_i32_15 = arith.constant 1 : i32
    %32 = vector.broadcast %c1_i32_15 : i32 to vector<10x32x2xi32>
    %33 = arith.cmpi sge, %24, %32 : vector<10x32x2xi32>
    %34 = vector.broadcast %31 : i1 to vector<10x32x2xi1>
    %35 = arith.ori %34, %33 : vector<10x32x2xi1>
    %36 = arith.andi %30, %35 : vector<10x32x2xi1>
    %c1_i32_16 = arith.constant 1 : i32
    %37 = arith.cmpi slt, %arg1, %c1_i32_16 : i32
    %c8_i32 = arith.constant 8 : i32
    %38 = vector.broadcast %c8_i32 : i32 to vector<10x32x2xi32>
    %39 = arith.cmpi sle, %24, %38 : vector<10x32x2xi32>
    %40 = vector.broadcast %37 : i1 to vector<10x32x2xi1>
    %41 = arith.ori %40, %39 : vector<10x32x2xi1>
    %42 = arith.andi %36, %41 : vector<10x32x2xi1>
    %cst_17 = arith.constant 0.000000e+00 : f32
    %43 = vector.broadcast %cst_17 : f32 to vector<10x32x2xf32>
    %44 = arith.select %42, %23, %43 : vector<10x32x2xi1>, vector<10x32x2xf32>
    %c0_18 = arith.constant 0 : index
    %c0_19 = arith.constant 0 : index
    %c0_20 = arith.constant 0 : index
    %45 = vector.load %arg11[%c0_18, %c0_19, %c0_20] : memref<10x32x2xf32, #tpu.memory_space<vmem>>, vector<10x32x2xf32>
    tpu.vector_store %arg11[%c0_18, %c0_19, %c0_20], %44 {strides = array<i32>} : memref<10x32x2xf32, #tpu.memory_space<vmem>>, vector<10x32x2xf32>,
    %c0_21 = arith.constant 0 : index
    %c0_22 = arith.constant 0 : index
    %c0_23 = arith.constant 0 : index
    %46 = vector.load %arg11[%c0_21, %c0_22, %c0_23] : memref<10x32x2xf32, #tpu.memory_space<vmem>>, vector<8x16x2xf32>
    %c0_24 = arith.constant 0 : index
    %c1 = arith.constant 1 : index
    %c0_25 = arith.constant 0 : index
    %47 = vector.load %arg11[%c0_24, %c1, %c0_25] : memref<10x32x2xf32, #tpu.memory_space<vmem>>, vector<8x16x2xf32>
    %c0_26 = arith.constant 0 : index
    %c2 = arith.constant 2 : index
    %c0_27 = arith.constant 0 : index
    %48 = vector.load %arg11[%c0_26, %c2, %c0_27] : memref<10x32x2xf32, #tpu.memory_space<vmem>>, vector<8x16x2xf32>
    %c1_28 = arith.constant 1 : index
    %c0_29 = arith.constant 0 : index
    %c0_30 = arith.constant 0 : index
    %49 = vector.load %arg11[%c1_28, %c0_29, %c0_30] : memref<10x32x2xf32, #tpu.memory_space<vmem>>, vector<8x16x2xf32>
    %c1_31 = arith.constant 1 : index
    %c1_32 = arith.constant 1 : index
    %c0_33 = arith.constant 0 : index
    %50 = vector.load %arg11[%c1_31, %c1_32, %c0_33] : memref<10x32x2xf32, #tpu.memory_space<vmem>>, vector<8x16x2xf32>
    %c1_34 = arith.constant 1 : index
    %c2_35 = arith.constant 2 : index
    %c0_36 = arith.constant 0 : index
    %51 = vector.load %arg11[%c1_34, %c2_35, %c0_36] : memref<10x32x2xf32, #tpu.memory_space<vmem>>, vector<8x16x2xf32>
    %c2_37 = arith.constant 2 : index
    %c0_38 = arith.constant 0 : index
    %c0_39 = arith.constant 0 : index
    %52 = vector.load %arg11[%c2_37, %c0_38, %c0_39] : memref<10x32x2xf32, #tpu.memory_space<vmem>>, vector<8x16x2xf32>
    %c2_40 = arith.constant 2 : index
    %c1_41 = arith.constant 1 : index
    %c0_42 = arith.constant 0 : index
    %53 = vector.load %arg11[%c2_40, %c1_41, %c0_42] : memref<10x32x2xf32, #tpu.memory_space<vmem>>, vector<8x16x2xf32>
    %c2_43 = arith.constant 2 : index
    %c2_44 = arith.constant 2 : index
    %c0_45 = arith.constant 0 : index
    %54 = vector.load %arg11[%c2_43, %c2_44, %c0_45] : memref<10x32x2xf32, #tpu.memory_space<vmem>>, vector<8x16x2xf32>
    %55 = tpu.concatenate %46, %47, %48, %49, %50, %51, %52, %53, %54 in 2 : vector<8x16x2xf32>, vector<8x16x2xf32>, vector<8x16x2xf32>, vector<8x16x2xf32>, vector<8x16x2xf32>, vector<8x16x2xf32>, vector<8x16x2xf32>, vector<8x16x2xf32>, vector<8x16x2xf32> -> vector<8x16x18xf32>
    %56 = vector.shape_cast %55 : vector<8x16x18xf32> to vector<128x18xf32>
    %57 = arith.truncf %56 : vector<128x18xf32> to vector<128x18xbf16>
    %c0_46 = arith.constant 0 : index
    %c0_47 = arith.constant 0 : index
    %58 = vector.load %arg7[%c0_46, %c0_47] : memref<18x4xbf16, #tpu.memory_space<vmem>>, vector<18x4xbf16>
    %cst_48 = arith.constant dense<0.000000e+00> : vector<128x4xf32>
    %59 = tpu.matmul %57, %58, %cst_48 {dimension_numbers = #tpu.dot_dimension_numbers<[1], [0], [0], [1], [0, 0, 1, 1], [], []>} : vector<128x18xbf16>, vector<18x4xbf16>, vector<128x4xf32> -> vector<128x4xf32>
    %c0_49 = arith.constant 0 : index
    %c0_50 = arith.constant 0 : index
    %60 = vector.load %arg8[%c0_49, %c0_50] : memref<1x4xf32, #tpu.memory_space<vmem>>, vector<1x4xf32>
    %61 = vector.broadcast %60 : vector<1x4xf32> to vector<128x4xf32>
    %62 = arith.mulf %59, %61 : vector<128x4xf32>
    %c0_51 = arith.constant 0 : index
    %c0_52 = arith.constant 0 : index
    %63 = vector.load %arg9[%c0_51, %c0_52] : memref<1x4xf32, #tpu.memory_space<vmem>>, vector<1x4xf32>
    %64 = vector.broadcast %63 : vector<1x4xf32> to vector<128x4xf32>
    %65 = arith.addf %62, %64 : vector<128x4xf32>
    %cst_53 = arith.constant 0.000000e+00 : f32
    %66 = vector.broadcast %cst_53 : f32 to vector<128x4xf32>
    %67 = arith.cmpf ogt, %65, %66 : vector<128x4xf32>
    %cst_54 = arith.constant 0.00999999977 : f32
    %68 = vector.broadcast %cst_54 : f32 to vector<128x4xf32>
    %69 = arith.mulf %68, %65 : vector<128x4xf32>
    %70 = arith.select %67, %65, %69 : vector<128x4xi1>, vector<128x4xf32>
    %c0_55 = arith.constant 0 : index
    %c0_56 = arith.constant 0 : index
    %c1_57 = arith.constant 1 : index
    %c0_58 = arith.constant 0 : index
    %71 = vector.load %arg2[%c0_55, %c0_56, %c1_57, %c0_58] : memref<1x8x32x4xf32, #tpu.memory_space<vmem>>, vector<1x8x16x4xf32>
    %72 = vector.shape_cast %71 : vector<1x8x16x4xf32> to vector<8x16x4xf32>
    %73 = vector.shape_cast %72 : vector<8x16x4xf32> to vector<128x4xf32>
    %74 = arith.addf %70, %73 : vector<128x4xf32>
    %75 = vector.shape_cast %74 : vector<128x4xf32> to vector<8x16x4xf32>
    %c0_59 = arith.constant 0 : index
    %c0_60 = arith.constant 0 : index
    %c0_61 = arith.constant 0 : index
    %c0_62 = arith.constant 0 : index
    %76 = vector.load %arg10[%c0_59, %c0_60, %c0_61, %c0_62] : memref<1x8x16x4xf32, #tpu.memory_space<vmem>>, vector<1x8x16x4xf32>
    %77 = vector.shape_cast %76 : vector<1x8x16x4xf32> to vector<8x16x4xf32>
    %78 = vector.shape_cast %75 : vector<8x16x4xf32> to vector<1x8x16x4xf32>
    tpu.vector_store %arg10[%c0_59, %c0_60, %c0_61, %c0_62], %78 {strides = array<i32>} : memref<1x8x16x4xf32, #tpu.memory_space<vmem>>, vector<1x8x16x4xf32>,
    return
  }
  func.func @transform_0(%arg0: i32, %arg1: i32) -> (i32, i32, i32, i32) {
    %c0_i32 = arith.constant 0 : i32
    %c0_i32_0 = arith.constant 0 : i32
    %c0_i32_1 = arith.constant 0 : i32
    return %arg0, %arg1, %c0_i32, %c0_i32_0 : i32, i32, i32, i32
  }
  func.func @transform_1(%arg0: i32, %arg1: i32) -> (i32, i32, i32, i32) {
    %c0_i32 = arith.constant 0 : i32
    %c0_i32_0 = arith.constant 0 : i32
    %c0_i32_1 = arith.constant 0 : i32
    return %arg0, %arg1, %c0_i32, %c0_i32_0 : i32, i32, i32, i32
  }
  func.func @transform_2(%arg0: i32, %arg1: i32) -> (i32, i32) {
    %c0_i32 = arith.constant 0 : i32
    %c0_i32_0 = arith.constant 0 : i32
    %c0_i32_1 = arith.constant 0 : i32
    return %c0_i32, %c0_i32_0 : i32, i32
  }
  func.func @transform_3(%arg0: i32, %arg1: i32) -> (i32, i32) {
    %c0_i32 = arith.constant 0 : i32
    %c0_i32_0 = arith.constant 0 : i32
    %c0_i32_1 = arith.constant 0 : i32
    return %c0_i32, %c0_i32_0 : i32, i32
  }
  func.func @transform_4(%arg0: i32, %arg1: i32) -> (i32, i32) {
    %c0_i32 = arith.constant 0 : i32
    %c0_i32_0 = arith.constant 0 : i32
    %c0_i32_1 = arith.constant 0 : i32
    return %c0_i32, %c0_i32_0 : i32, i32
  }
  func.func @transform_5(%arg0: i32, %arg1: i32) -> (i32, i32) {
    %c0_i32 = arith.constant 0 : i32
    %c0_i32_0 = arith.constant 0 : i32
    %c0_i32_1 = arith.constant 0 : i32
    return %c0_i32, %c0_i32_0 : i32, i32
  }
  func.func @transform_6(%arg0: i32, %arg1: i32) -> (i32, i32) {
    %c0_i32 = arith.constant 0 : i32
    %c0_i32_0 = arith.constant 0 : i32
    %c0_i32_1 = arith.constant 0 : i32
    return %c0_i32, %c0_i32_0 : i32, i32
  }
  func.func @transform_7(%arg0: i32, %arg1: i32) -> (i32, i32) {
    %c0_i32 = arith.constant 0 : i32
    %c0_i32_0 = arith.constant 0 : i32
    %c0_i32_1 = arith.constant 0 : i32
    return %c0_i32, %c0_i32_0 : i32, i32
  }
  func.func @transform_8(%arg0: i32, %arg1: i32) -> (i32, i32, i32, i32) {
    %c0_i32 = arith.constant 0 : i32
    %c0_i32_0 = arith.constant 0 : i32
    %c0_i32_1 = arith.constant 0 : i32
    return %arg0, %arg1, %c0_i32, %c0_i32_0 : i32, i32, i32, i32
  }
}

</mosaic_0001>

<llo_original>
// kernel: tpu_custom_call.1
$region0: #{tpu_custom_call.1}
  #allocation0 [shape = 'u32[]', space=smem, size = 0x4, offset = 0x4, fixed_abs, tag = 'smem constant byte address 0x4 - core index']
  #allocation1 [shape = 'u32[144,128]{1,0:T(1,128)}', space=vmem, size = 0x12000, scoped, tag = 'internal scratch']
  #allocation2 [shape = 'f32[10,32,2]{2,1,0:T(8,128)}', space=vmem, size = 0x28000, scoped, tag = 'scratch operand']
  %s0 = inlined_call_operand.vmem [shape: f32[2,16,32,4], index: 0, kind: input, shape index: {}]
  %s1 = inlined_call_operand.vmem [shape: f32[2,4,32,4], index: 1, kind: input, shape index: {}]
  %s2 = inlined_call_operand.vmem [shape: bf16[4,2], index: 2, kind: input, shape index: {}]
  %s3 = inlined_call_operand.vmem [shape: f32[1,2], index: 3, kind: input, shape index: {}]
  %s4 = inlined_call_operand.vmem [shape: f32[1,2], index: 4, kind: input, shape index: {}]
  %s5 = inlined_call_operand.vmem [shape: bf16[18,4], index: 5, kind: input, shape index: {}]
  %s6 = inlined_call_operand.vmem [shape: f32[1,4], index: 6, kind: input, shape index: {}]
  %s7 = inlined_call_operand.vmem [shape: f32[1,4], index: 7, kind: input, shape index: {}]
  %s8 = inlined_call_operand.vmem [shape: f32[2,16,16,4], index: 8, kind: output, shape index: {}]
  %s9 = sld [smem:[#allocation0]]
  $region65: #{tpu_custom_call.1} parent=0
    _
  %s11 = ssub.s32 1, %s9
  %s12 = scalar_select 0, %s11, %s9
  loop: start=0, step=1, limit=6
  $region2: #{tpu_custom_call.1} parent=0 // loop_pre_header
    _
  $region3: #{tpu_custom_call.1} parent=0 // loop_header
    %s14 = sphi 0, %s18
    %p15 = scmp.ge.s32.totalorder %s14, 6
    %s21 = sphi 0, %s33
    %s22 = sphi 0, %s29
    %s23 = sphi 0, %s21
    %s24 = sphi 0, %s22
    %s25 = sphi 0, %s23
    %s26 = sphi 0, %s24
    %s38 = sphi 0, %s40
    %s41 = sphi 0, %s38
    %s42 = sphi 0, %s41
    %s58 = sphi 0, %s42
    %s66 = sphi 0, %s68
    %s69 = sphi 0, %s66
    %s70 = sphi 0, %s69
    %s86 = sphi 0, %s70
    %s90 = sphi 0, %s90
    %s92 = sphi 0, %s90
    %s93 = sphi 0, %s92
    %s107 = sphi 0, %s93
    %s111 = sphi 0, %s111
    %s113 = sphi 0, %s111
    %s114 = sphi 0, %s113
    %s128 = sphi 0, %s114
    %s132 = sphi 0, %s132
    %s134 = sphi 0, %s132
    %s135 = sphi 0, %s134
    %s149 = sphi 0, %s135
    %s153 = sphi 0, %s153
    %s155 = sphi 0, %s153
    %s156 = sphi 0, %s155
    %s170 = sphi 0, %s156
    %s174 = sphi 0, %s174
    %s176 = sphi 0, %s174
    %s177 = sphi 0, %s176
    %s191 = sphi 0, %s177
    %s195 = sphi 0, %s195
    %s197 = sphi 0, %s195
    %s198 = sphi 0, %s197
    %s212 = sphi 0, %s198
    %s220 = sphi 0, %s222
    %s223 = sphi 0, %s220
    %s224 = sphi 0, %s223
    %s240 = sphi 0, %s224
  $region4: #{tpu_custom_call.1} parent=0 // loop_header_branch
    %17 = sbr.rel (%p15) target = $region8
  $region5: #{tpu_custom_call.1} parent=0 // loop_body
    %s19 = ssub.s32 %s14, 1
    %s20 = ssub.s32 %s14, 2
    %s27 = sadd.s32 1, %s22
    %p28 = scmp.ge.s32.totalorder %s27, 2
    %s29 = scalar_select %p28, 0, %s27
    %s30 = sadd.s32 1, %s21
    %s31 = scalar_select %p28, %s30, %s21
    %p32 = scmp.ge.s32.totalorder %s31, 2
    %s33 = scalar_select %p32, 0, %s31
    %s34 = ssub.s32 %s21, %s33
    %s35 = ssub.s32 %s22, %s29
    %s36 = sor.u32 %s34, %s35
    %p37 = scmp.eq.s32.totalorder %s36, 0
    %s39 = sadd.s32 %s38, 1
    %s40 = scalar_select %p37, %s38, %s39
    %p43 = pneg %p37
    %p44 = scmp.eq.s32.totalorder %s14, 3
    %p45 = por %p43, %p44
    %p46 = scmp.ne.s32.totalorder %s38, %s41
    %p47 = scmp.eq.s32.totalorder %s14, 0
    %p48 = por %p46, %p47
    %p49 = scmp.ne.s32.totalorder %s38, %s41
    %p50 = scmp.eq.s32.totalorder %s19, 3
    %p51 = por %p49, %p50
    %p52 = scmp.ne.s32.totalorder %s41, %s42
    %p53 = scmp.eq.s32.totalorder %s19, 0
    %p54 = por %p52, %p53
    %p55 = scmp.ne.s32.totalorder %s41, %s42
    %p56 = scmp.eq.s32.totalorder %s20, 3
    %p57 = por %p55, %p56
    %p59 = scmp.ne.s32.totalorder %s42, %s58
    %p60 = scmp.eq.s32.totalorder %s20, 0
    %p61 = por %p59, %p60
    %s62 = ssub.s32 %s21, %s33
    %s63 = ssub.s32 %s22, %s29
    %s64 = sor.u32 %s62, %s63
    %p65 = scmp.eq.s32.totalorder %s64, 0
    %s67 = sadd.s32 %s66, 1
    %s68 = scalar_select %p65, %s66, %s67
    %p71 = pneg %p65
    %p72 = scmp.eq.s32.totalorder %s14, 3
    %p73 = por %p71, %p72
    %p74 = scmp.ne.s32.totalorder %s66, %s69
    %p75 = scmp.eq.s32.totalorder %s14, 0
    %p76 = por %p74, %p75
    %p77 = scmp.ne.s32.totalorder %s66, %s69
    %p78 = scmp.eq.s32.totalorder %s19, 3
    %p79 = por %p77, %p78
    %p80 = scmp.ne.s32.totalorder %s69, %s70
    %p81 = scmp.eq.s32.totalorder %s19, 0
    %p82 = por %p80, %p81
    %p83 = scmp.ne.s32.totalorder %s69, %s70
    %p84 = scmp.eq.s32.totalorder %s20, 3
    %p85 = por %p83, %p84
    %p87 = scmp.ne.s32.totalorder %s70, %s86
    %p88 = scmp.eq.s32.totalorder %s20, 0
    %p89 = por %p87, %p88
    %s91 = sadd.s32 %s90, 1
    %p94 = scmp.eq.s32.totalorder %s14, 3
    %p95 = scmp.ne.s32.totalorder %s90, %s92
    %p96 = scmp.eq.s32.totalorder %s14, 0
    %p97 = por %p95, %p96
    %p98 = scmp.ne.s32.totalorder %s90, %s92
    %p99 = scmp.eq.s32.totalorder %s19, 3
    %p100 = por %p98, %p99
    %p101 = scmp.ne.s32.totalorder %s92, %s93
    %p102 = scmp.eq.s32.totalorder %s19, 0
    %p103 = por %p101, %p102
    %p104 = scmp.ne.s32.totalorder %s92, %s93
    %p105 = scmp.eq.s32.totalorder %s20, 3
    %p106 = por %p104, %p105
    %p108 = scmp.ne.s32.totalorder %s93, %s107
    %p109 = scmp.eq.s32.totalorder %s20, 0
    %p110 = por %p108, %p109
    %s112 = sadd.s32 %s111, 1
    %p115 = scmp.eq.s32.totalorder %s14, 3
    %p116 = scmp.ne.s32.totalorder %s111, %s113
    %p117 = scmp.eq.s32.totalorder %s14, 0
    %p118 = por %p116, %p117
    %p119 = scmp.ne.s32.totalorder %s111, %s113
    %p120 = scmp.eq.s32.totalorder %s19, 3
    %p121 = por %p119, %p120
    %p122 = scmp.ne.s32.totalorder %s113, %s114
    %p123 = scmp.eq.s32.totalorder %s19, 0
    %p124 = por %p122, %p123
    %p125 = scmp.ne.s32.totalorder %s113, %s114
    %p126 = scmp.eq.s32.totalorder %s20, 3
    %p127 = por %p125, %p126
    %p129 = scmp.ne.s32.totalorder %s114, %s128
    %p130 = scmp.eq.s32.totalorder %s20, 0
    %p131 = por %p129, %p130
    %s133 = sadd.s32 %s132, 1
    %p136 = scmp.eq.s32.totalorder %s14, 3
    %p137 = scmp.ne.s32.totalorder %s132, %s134
    %p138 = scmp.eq.s32.totalorder %s14, 0
    %p139 = por %p137, %p138
    %p140 = scmp.ne.s32.totalorder %s132, %s134
    %p141 = scmp.eq.s32.totalorder %s19, 3
    %p142 = por %p140, %p141
    %p143 = scmp.ne.s32.totalorder %s134, %s135
    %p144 = scmp.eq.s32.totalorder %s19, 0
    %p145 = por %p143, %p144
    %p146 = scmp.ne.s32.totalorder %s134, %s135
    %p147 = scmp.eq.s32.totalorder %s20, 3
    %p148 = por %p146, %p147
    %p150 = scmp.ne.s32.totalorder %s135, %s149
    %p151 = scmp.eq.s32.totalorder %s20, 0
    %p152 = por %p150, %p151
    %s154 = sadd.s32 %s153, 1
    %p157 = scmp.eq.s32.totalorder %s14, 3
    %p158 = scmp.ne.s32.totalorder %s153, %s155
    %p159 = scmp.eq.s32.totalorder %s14, 0
    %p160 = por %p158, %p159
    %p161 = scmp.ne.s32.totalorder %s153, %s155
    %p162 = scmp.eq.s32.totalorder %s19, 3
    %p163 = por %p161, %p162
    %p164 = scmp.ne.s32.totalorder %s155, %s156
    %p165 = scmp.eq.s32.totalorder %s19, 0
    %p166 = por %p164, %p165
    %p167 = scmp.ne.s32.totalorder %s155, %s156
    %p168 = scmp.eq.s32.totalorder %s20, 3
    %p169 = por %p167, %p168
    %p171 = scmp.ne.s32.totalorder %s156, %s170
    %p172 = scmp.eq.s32.totalorder %s20, 0
    %p173 = por %p171, %p172
    %s175 = sadd.s32 %s174, 1
    %p178 = scmp.eq.s32.totalorder %s14, 3
    %p179 = scmp.ne.s32.totalorder %s174, %s176
    %p180 = scmp.eq.s32.totalorder %s14, 0
    %p181 = por %p179, %p180
    %p182 = scmp.ne.s32.totalorder %s174, %s176
    %p183 = scmp.eq.s32.totalorder %s19, 3
    %p184 = por %p182, %p183
    %p185 = scmp.ne.s32.totalorder %s176, %s177
    %p186 = scmp.eq.s32.totalorder %s19, 0
    %p187 = por %p185, %p186
    %p188 = scmp.ne.s32.totalorder %s176, %s177
    %p189 = scmp.eq.s32.totalorder %s20, 3
    %p190 = por %p188, %p189
    %p192 = scmp.ne.s32.totalorder %s177, %s191
    %p193 = scmp.eq.s32.totalorder %s20, 0
    %p194 = por %p192, %p193
    %s196 = sadd.s32 %s195, 1
    %p199 = scmp.eq.s32.totalorder %s14, 3
    %p200 = scmp.ne.s32.totalorder %s195, %s197
    %p201 = scmp.eq.s32.totalorder %s14, 0
    %p202 = por %p200, %p201
    %p203 = scmp.ne.s32.totalorder %s195, %s197
    %p204 = scmp.eq.s32.totalorder %s19, 3
    %p205 = por %p203, %p204
    %p206 = scmp.ne.s32.totalorder %s197, %s198
    %p207 = scmp.eq.s32.totalorder %s19, 0
    %p208 = por %p206, %p207
    %p209 = scmp.ne.s32.totalorder %s197, %s198
    %p210 = scmp.eq.s32.totalorder %s20, 3
    %p211 = por %p209, %p210
    %p213 = scmp.ne.s32.totalorder %s198, %s212
    %p214 = scmp.eq.s32.totalorder %s20, 0
    %p215 = por %p213, %p214
    %s216 = ssub.s32 %s21, %s33
    %s217 = ssub.s32 %s22, %s29
    %s218 = sor.u32 %s216, %s217
    %p219 = scmp.eq.s32.totalorder %s218, 0
    %s221 = sadd.s32 %s220, 1
    %s222 = scalar_select %p219, %s220, %s221
    %p225 = pneg %p219
    %p226 = scmp.eq.s32.totalorder %s14, 3
    %p227 = por %p225, %p226
    %p228 = scmp.ne.s32.totalorder %s220, %s223
    %p229 = scmp.eq.s32.totalorder %s14, 0
    %p230 = por %p228, %p229
    %p231 = scmp.ne.s32.totalorder %s220, %s223
    %p232 = scmp.eq.s32.totalorder %s19, 3
    %p233 = por %p231, %p232
    %p234 = scmp.ne.s32.totalorder %s223, %s224
    %p235 = scmp.eq.s32.totalorder %s19, 0
    %p236 = por %p234, %p235
    %p237 = scmp.ne.s32.totalorder %s223, %s224
    %p238 = scmp.eq.s32.totalorder %s20, 3
    %p239 = por %p237, %p238
    %p241 = scmp.ne.s32.totalorder %s224, %s240
    %p242 = scmp.eq.s32.totalorder %s20, 0
    %p243 = por %p241, %p242
    %p244 = scmp.le.s32.totalorder 1, %s14
    %p245 = scmp.lt.s32.totalorder %s14, 5
    %p246 = pnand %p244, %p245
    %p247 = pneg %p246
    // Predicated region
    $region9: #{tpu_custom_call.1} parent=5 // pred_check
      _
    $region10: #{tpu_custom_call.1} parent=5 // pred_check_branch
      %249 = sbr.rel (%p246) target = $region12
    $region11: #{tpu_custom_call.1} parent=5 // pred_region
      %s250 = ssub.s32 %s14, 1
      // Predicated region
      $region13: #{tpu_custom_call.1} parent=11 // pred_check
        %p251 = pneg %p103
      $region14: #{tpu_custom_call.1} parent=11 // pred_check_branch
        %253 = sbr.rel (%p251) target = $region16
      $region15: #{tpu_custom_call.1} parent=11 // pred_region
        _
      $region16: #{tpu_custom_call.1} parent=11 // pred_fallthru
        _
      // Predicated region
      $region17: #{tpu_custom_call.1} parent=11 // pred_check
        %p254 = pneg %p124
      $region18: #{tpu_custom_call.1} parent=11 // pred_check_branch
        %256 = sbr.rel (%p254) target = $region20
      $region19: #{tpu_custom_call.1} parent=11 // pred_region
        _
      $region20: #{tpu_custom_call.1} parent=11 // pred_fallthru
        _
      // Predicated region
      $region21: #{tpu_custom_call.1} parent=11 // pred_check
        %p257 = pneg %p145
      $region22: #{tpu_custom_call.1} parent=11 // pred_check_branch
        %259 = sbr.rel (%p257) target = $region24
      $region23: #{tpu_custom_call.1} parent=11 // pred_region
        _
      $region24: #{tpu_custom_call.1} parent=11 // pred_fallthru
        _
      // Predicated region
      $region25: #{tpu_custom_call.1} parent=11 // pred_check
        %p260 = pneg %p166
      $region26: #{tpu_custom_call.1} parent=11 // pred_check_branch
        %262 = sbr.rel (%p260) target = $region28
      $region27: #{tpu_custom_call.1} parent=11 // pred_region
        _
      $region28: #{tpu_custom_call.1} parent=11 // pred_fallthru
        _
      // Predicated region
      $region29: #{tpu_custom_call.1} parent=11 // pred_check
        %p263 = pneg %p187
      $region30: #{tpu_custom_call.1} parent=11 // pred_check_branch
        %265 = sbr.rel (%p263) target = $region32
      $region31: #{tpu_custom_call.1} parent=11 // pred_region
        _
      $region32: #{tpu_custom_call.1} parent=11 // pred_fallthru
        _
      // Predicated region
      $region33: #{tpu_custom_call.1} parent=11 // pred_check
        %p266 = pneg %p208
      $region34: #{tpu_custom_call.1} parent=11 // pred_check_branch
        %268 = sbr.rel (%p266) target = $region36
      $region35: #{tpu_custom_call.1} parent=11 // pred_region
        _
      $region36: #{tpu_custom_call.1} parent=11 // pred_fallthru
        _
    $region12: #{tpu_custom_call.1} parent=5 // pred_fallthru
      _
    %p269 = scmp.lt.s32.totalorder %s14, 4
    // Predicated region
    $region37: #{tpu_custom_call.1} parent=5 // pred_check
      %p270 = pneg %p269
    $region38: #{tpu_custom_call.1} parent=5 // pred_check_branch
      %272 = sbr.rel (%p270) target = $region40
    $region39: #{tpu_custom_call.1} parent=5 // pred_region
      // Predicated region
      $region41: #{tpu_custom_call.1} parent=39 // pred_check
        %p273 = pneg %p48
      $region42: #{tpu_custom_call.1} parent=39 // pred_check_branch
        %275 = sbr.rel (%p273) target = $region44
      $region43: #{tpu_custom_call.1} parent=39 // pred_region
        %s276 = smul.u32 8, %s22
        %p277 = scmp.lt.s32.totalorder %s21, 1
        %s278 = scalar_select %p277, %s21, 1
        %p279 = scmp.lt.s32.totalorder %s276, 15
        %s280 = scalar_select %p279, %s276, 15
        %s281 = smul.addr %s280, 4
        %s282 = smul.addr %s278, 64
        %s283 = sadd.s32 %s281, %s282
        %s284 = smul.addr %s283, 8
        %s285 = scalar_lea.vmem %s0, %s284
        %s286 = smul.u32 8, %s22
      $region44: #{tpu_custom_call.1} parent=39 // pred_fallthru
        _
      // Predicated region
      $region45: #{tpu_custom_call.1} parent=39 // pred_check
        %p287 = pneg %p76
      $region46: #{tpu_custom_call.1} parent=39 // pred_check_branch
        %289 = sbr.rel (%p287) target = $region48
      $region47: #{tpu_custom_call.1} parent=39 // pred_region
        %s290 = smul.u32 2, %s22
        %p291 = scmp.lt.s32.totalorder %s21, 1
        %s292 = scalar_select %p291, %s21, 1
        %p293 = scmp.lt.s32.totalorder %s290, 3
        %s294 = scalar_select %p293, %s290, 3
        %s295 = smul.addr %s294, 4
        %s296 = smul.addr %s292, 16
        %s297 = sadd.s32 %s295, %s296
        %s298 = smul.addr %s297, 8
        %s299 = scalar_lea.vmem %s1, %s298
        %s300 = smul.u32 2, %s22
      $region48: #{tpu_custom_call.1} parent=39 // pred_fallthru
        _
    $region40: #{tpu_custom_call.1} parent=5 // pred_fallthru
      _
    %p301 = scmp.le.s32.totalorder 1, %s14
    %p302 = scmp.lt.s32.totalorder %s14, 5
    %p303 = pnand %p301, %p302
    %p304 = pneg %p303
    // Predicated region
    $region49: #{tpu_custom_call.1} parent=5 // pred_check
      _
    $region50: #{tpu_custom_call.1} parent=5 // pred_check_branch
      %306 = sbr.rel (%p303) target = $region52
    $region51: #{tpu_custom_call.1} parent=5 // pred_region
      %s307 = ssub.s32 %s14, 1
      %s308 = smul.u32 8, %s24
      %p309 = scmp.lt.s32.totalorder %s23, 1
      %s310 = scalar_select %p309, %s23, 1
      %p311 = scmp.lt.s32.totalorder %s308, 15
      %s312 = scalar_select %p311, %s308, 15
      %s313 = smul.addr %s312, 4
      %s314 = smul.addr %s310, 64
      %s315 = sadd.s32 %s313, %s314
      %s316 = smul.addr %s315, 8
      %s317 = scalar_lea.vmem %s0, %s316
      %p318 = pneg %p54
      %p319 = pneg %p51
      %s320 = smul.u32 2, %s24
      %p321 = scmp.lt.s32.totalorder %s23, 1
      %s322 = scalar_select %p321, %s23, 1
      %p323 = scmp.lt.s32.totalorder %s320, 3
      %s324 = scalar_select %p323, %s320, 3
      %s325 = smul.addr %s324, 4
      %s326 = smul.addr %s322, 16
      %s327 = sadd.s32 %s325, %s326
      %s328 = smul.addr %s327, 8
      %s329 = scalar_lea.vmem %s1, %s328
      %p330 = pneg %p82
      %p331 = pneg %p79
      %p332 = pneg %p103
      %p333 = pneg %p100
      %p334 = pneg %p124
      %p335 = pneg %p121
      %p336 = pneg %p145
      %p337 = pneg %p142
      %p338 = pneg %p166
      %p339 = pneg %p163
      %p340 = pneg %p187
      %p341 = pneg %p184
      %p342 = pneg %p208
      %p343 = pneg %p205
      %p344 = pneg %p236
      %p345 = pneg %p233
      %s346 = smul.u32 8, %s24
      %p347 = scmp.lt.s32.totalorder %s23, 1
      %s348 = scalar_select %p347, %s23, 1
      %p349 = scmp.lt.s32.totalorder %s346, 15
      %s350 = scalar_select %p349, %s346, 15
      %s351 = smul.addr %s350, 2
      %s352 = smul.addr %s348, 32
      %s353 = sadd.s32 %s351, %s352
      %s354 = smul.addr %s353, 8
      %s355 = scalar_lea.vmem %s8, %s354
      %s356 = smul.u32 8, %s24
      %p357 = scmp.lt.s32.totalorder %s23, 1
      %s358 = scalar_select %p357, %s23, 1
      %p359 = scmp.lt.s32.totalorder %s356, 15
      %s360 = scalar_select %p359, %s356, 15
      %s361 = smul.addr %s360, 4
      %s362 = smul.addr %s358, 64
      %s363 = sadd.s32 %s361, %s362
      %s364 = smul.addr %s363, 8
      %s365 = scalar_lea.vmem %s0, %s364
      %s366 = smul.u32 8, %s24
      %s367 = smul.u32 2, %s24
      %p368 = scmp.lt.s32.totalorder %s23, 1
      %s369 = scalar_select %p368, %s23, 1
      %p370 = scmp.lt.s32.totalorder %s367, 3
      %s371 = scalar_select %p370, %s367, 3
      %s372 = smul.addr %s371, 4
      %s373 = smul.addr %s369, 16
      %s374 = sadd.s32 %s372, %s373
      %s375 = smul.addr %s374, 8
      %s376 = scalar_lea.vmem %s1, %s375
      %s377 = smul.u32 2, %s24
      %s378 = smul.u32 8, %s24
      %p379 = scmp.lt.s32.totalorder %s23, 1
      %s380 = scalar_select %p379, %s23, 1
      %p381 = scmp.lt.s32.totalorder %s378, 15
      %s382 = scalar_select %p381, %s378, 15
      %s383 = smul.addr %s382, 2
      %s384 = smul.addr %s380, 32
      %s385 = sadd.s32 %s383, %s384
      %s386 = smul.addr %s385, 8
      %s387 = scalar_lea.vmem %s8, %s386
      %s388 = smul.u32 8, %s24
      %v390 = vld [vmem:[%s376] sm:$0xff]
      %v391 = vld [vmem:[%s376 + $0x8] sm:$0xff]
      %v392 = vld [vmem:[%s376 + $0x10] sm:$0xff]
      %v393 = vld [vmem:[%s376 + $0x18] sm:$0xff]
      %v394 = vld [vmem:[%s376 + $0x20] sm:$0xff]
      %v395 = vld [vmem:[%s376 + $0x28] sm:$0xff]
      %v396 = vld [vmem:[%s376 + $0x30] sm:$0xff]
      %v397 = vld [vmem:[%s376 + $0x38] sm:$0xff]
      %v398 = vpack.c.bf16 %v391, %v390
      %v399 = vpack.c.bf16 %v393, %v392
      %v400 = vpack.c.bf16 %v395, %v394
      %v401 = vpack.c.bf16 %v397, %v396
      %v402 = vld [vmem:[%s365] sm:$0xff]
      %v403 = vld [vmem:[%s365 + $0x8] sm:$0xff]
      %v404 = vld [vmem:[%s365 + $0x10] sm:$0xff]
      %v405 = vld [vmem:[%s365 + $0x18] sm:$0xff]
      %v406 = vld [vmem:[%s365 + $0x20] sm:$0xff]
      %v407 = vld [vmem:[%s365 + $0x28] sm:$0xff]
      %v408 = vld [vmem:[%s365 + $0x30] sm:$0xff]
      %v409 = vld [vmem:[%s365 + $0x38] sm:$0xff]
      %v410 = vld [vmem:[%s365 + $0x40] sm:$0xff]
      %v411 = vld [vmem:[%s365 + $0x48] sm:$0xff]
      %v412 = vld [vmem:[%s365 + $0x50] sm:$0xff]
      %v413 = vld [vmem:[%s365 + $0x58] sm:$0xff]
      %v414 = vld [vmem:[%s365 + $0x60] sm:$0xff]
      %v415 = vld [vmem:[%s365 + $0x68] sm:$0xff]
      %v416 = vld [vmem:[%s365 + $0x70] sm:$0xff]
      %v417 = vld [vmem:[%s365 + $0x78] sm:$0xff]
      %v418 = vld [vmem:[%s365 + $0x80] sm:$0xff]
      %v419 = vld [vmem:[%s365 + $0x88] sm:$0xff]
      %v420 = vld [vmem:[%s365 + $0x90] sm:$0xff]
      %v421 = vld [vmem:[%s365 + $0x98] sm:$0xff]
      %v422 = vld [vmem:[%s365 + $0xa0] sm:$0xff]
      %v423 = vld [vmem:[%s365 + $0xa8] sm:$0xff]
      %v424 = vld [vmem:[%s365 + $0xb0] sm:$0xff]
      %v425 = vld [vmem:[%s365 + $0xb8] sm:$0xff]
      %v426 = vld [vmem:[%s365 + $0xc0] sm:$0xff]
      %v427 = vld [vmem:[%s365 + $0xc8] sm:$0xff]
      %v428 = vld [vmem:[%s365 + $0xd0] sm:$0xff]
      %v429 = vld [vmem:[%s365 + $0xd8] sm:$0xff]
      %v430 = vld [vmem:[%s365 + $0xe0] sm:$0xff]
      %v431 = vld [vmem:[%s365 + $0xe8] sm:$0xff]
      %v432 = vld [vmem:[%s365 + $0xf0] sm:$0xff]
      %v433 = vld [vmem:[%s365 + $0xf8] sm:$0xff]
      %v434 = vpack.c.bf16 %v403, %v402
      %v435 = vpack.c.bf16 %v405, %v404
      %v436 = vpack.c.bf16 %v407, %v406
      %v437 = vpack.c.bf16 %v409, %v408
      %v438 = vpack.c.bf16 %v411, %v410
      %v439 = vpack.c.bf16 %v413, %v412
      %v440 = vpack.c.bf16 %v415, %v414
      %v441 = vpack.c.bf16 %v417, %v416
      %v442 = vpack.c.bf16 %v419, %v418
      %v443 = vpack.c.bf16 %v421, %v420
      %v444 = vpack.c.bf16 %v423, %v422
      %v445 = vpack.c.bf16 %v425, %v424
      %v446 = vpack.c.bf16 %v427, %v426
      %v447 = vpack.c.bf16 %v429, %v428
      %v448 = vpack.c.bf16 %v431, %v430
      %v449 = vpack.c.bf16 %v433, %v432
      %v450 = vld [vmem:[%s2] sm:$0x3]
      %vm451 = vcmask 31744
      %v453 = vsel %vm451, %v398, 0
      %v456 = vsel %vm451, %v399, 0
      %v459 = vsel %vm451, %v434, 0
      %v462 = vsel %vm451, %v435, 0
      %v465 = vsel %vm451, %v436, 0
      %v468 = vsel %vm451, %v437, 0
      %v471 = vsel %vm451, %v438, 0
      %v474 = vsel %vm451, %v439, 0
      %v477 = vsel %vm451, %v440, 0
      %v480 = vsel %vm451, %v441, 0
      %v483 = vsel %vm451, %v442, 0
      %v486 = vsel %vm451, %v443, 0
      %v489 = vsel %vm451, %v444, 0
      %v492 = vsel %vm451, %v445, 0
      %v495 = vsel %vm451, %v446, 0
      %v498 = vsel %vm451, %v447, 0
      %v501 = vsel %vm451, %v448, 0
      %v504 = vsel %vm451, %v449, 0
      %v507 = vsel %vm451, %v400, 0
      %v510 = vsel %vm451, %v401, 0
      %vm512 = vcmask 1041408
      %v514 = vsel %vm512, %v450, 0
      %516 = vmatprep.subr.bf16.mxu0 0
      %517 = vmatpush1.bf16.msra.mxu0 0
      %518 = vmatprep.subr.bf16.mxu0 0
      %519 = vmatpush1.bf16.msra.mxu0 0
      %520 = vmatprep.subr.bf16.mxu0 0
      %521 = vmatpush1.bf16.msra.mxu0 0
      %522 = vmatprep.subr.bf16.mxu0 0
      %523 = vmatpush1.bf16.msra.mxu0 0
      %524 = vmatprep.subr.bf16.mxu0 0
      %525 = vmatpush1.bf16.msra.mxu0 0
      %526 = vmatprep.subr.bf16.mxu0 0
      %527 = vmatpush1.bf16.msra.mxu0 0
      %528 = vmatprep.subr.bf16.mxu0 0
      %529 = vmatpush1.bf16.msra.mxu0 0
      %530 = vmatprep.subr.bf16.mxu0 0
      %531 = vmatpush1.bf16.msra.mxu0 %v514
      %532 = vmatprep.subr.bf16.mxu0 0
      %533 = vmatpush2.bf16.msra.mxu0 0
      %534 = vmatprep.subr.bf16.mxu0 0
      %535 = vmatpush2.bf16.msra.mxu0 0
      %536 = vmatprep.subr.bf16.mxu0 0
      %537 = vmatpush2.bf16.msra.mxu0 0
      %538 = vmatprep.subr.bf16.mxu0 0
      %539 = vmatpush2.bf16.msra.mxu0 0
      %540 = vmatprep.subr.bf16.mxu0 0
      %541 = vmatpush2.bf16.msra.mxu0 0
      %542 = vmatprep.subr.bf16.mxu0 0
      %543 = vmatpush2.bf16.msra.mxu0 0
      %544 = vmatprep.subr.bf16.mxu0 0
      %545 = vmatpush2.bf16.msra.mxu0 0
      %546 = vmatprep.subr.bf16.mxu0 0
      %547 = vmatpush2.bf16.msra.mxu0 0
      %548 = vmatprep.mubr.bf16.mxu0 0
      %549 = vmatmul.mubr.bf16.gmra.mxu0 %v453
      %v550 = vpop.f32.mrf.mxu0
      %v551 = vadd.f32 0.0, %v550
      %v552 = vpop.f32.mrf.mxu0
      %v553 = vpop.f32.mrf.mxu0
      %v554 = vadd.f32 0.0, %v553
      %v555 = vpop.f32.mrf.mxu0
      %556 = vmatprep.mubr.bf16.mxu0 0
      %557 = vmatmul.mubr.bf16.gmra.mxu0 %v456
      %v558 = vpop.f32.mrf.mxu0
      %v559 = vadd.f32 0.0, %v558
      %v560 = vpop.f32.mrf.mxu0
      %v561 = vpop.f32.mrf.mxu0
      %v562 = vadd.f32 0.0, %v561
      %v563 = vpop.f32.mrf.mxu0
      %564 = vmatprep.mubr.bf16.mxu0 0
      %565 = vmatmul.mubr.bf16.gmra.mxu0 %v459
      %v566 = vpop.f32.mrf.mxu0
      %v567 = vadd.f32 0.0, %v566
      %v568 = vpop.f32.mrf.mxu0
      %v569 = vpop.f32.mrf.mxu0
      %v570 = vadd.f32 0.0, %v569
      %v571 = vpop.f32.mrf.mxu0
      %572 = vmatprep.mubr.bf16.mxu0 0
      %573 = vmatmul.mubr.bf16.gmra.mxu0 %v462
      %v574 = vpop.f32.mrf.mxu0
      %v575 = vadd.f32 0.0, %v574
      %v576 = vpop.f32.mrf.mxu0
      %v577 = vpop.f32.mrf.mxu0
      %v578 = vadd.f32 0.0, %v577
      %v579 = vpop.f32.mrf.mxu0
      %580 = vmatprep.mubr.bf16.mxu0 0
      %581 = vmatmul.mubr.bf16.gmra.mxu0 %v465
      %v582 = vpop.f32.mrf.mxu0
      %v583 = vadd.f32 0.0, %v582
      %v584 = vpop.f32.mrf.mxu0
      %v585 = vpop.f32.mrf.mxu0
      %v586 = vadd.f32 0.0, %v585
      %v587 = vpop.f32.mrf.mxu0
      %588 = vmatprep.mubr.bf16.mxu0 0
      %589 = vmatmul.mubr.bf16.gmra.mxu0 %v468
      %v590 = vpop.f32.mrf.mxu0
      %v591 = vadd.f32 0.0, %v590
      %v592 = vpop.f32.mrf.mxu0
      %v593 = vpop.f32.mrf.mxu0
      %v594 = vadd.f32 0.0, %v593
      %v595 = vpop.f32.mrf.mxu0
      %596 = vmatprep.mubr.bf16.mxu0 0
      %597 = vmatmul.mubr.bf16.gmra.mxu0 %v471
      %v598 = vpop.f32.mrf.mxu0
      %v599 = vadd.f32 0.0, %v598
      %v600 = vpop.f32.mrf.mxu0
      %v601 = vpop.f32.mrf.mxu0
      %v602 = vadd.f32 0.0, %v601
      %v603 = vpop.f32.mrf.mxu0
      %604 = vmatprep.mubr.bf16.mxu0 0
      %605 = vmatmul.mubr.bf16.gmra.mxu0 %v474
      %v606 = vpop.f32.mrf.mxu0
      %v607 = vadd.f32 0.0, %v606
      %v608 = vpop.f32.mrf.mxu0
      %v609 = vpop.f32.mrf.mxu0
      %v610 = vadd.f32 0.0, %v609
      %v611 = vpop.f32.mrf.mxu0
      %612 = vmatprep.mubr.bf16.mxu0 0
      %613 = vmatmul.mubr.bf16.gmra.mxu0 %v477
      %v614 = vpop.f32.mrf.mxu0
      %v615 = vadd.f32 0.0, %v614
      %v616 = vpop.f32.mrf.mxu0
      %v617 = vpop.f32.mrf.mxu0
      %v618 = vadd.f32 0.0, %v617
      %v619 = vpop.f32.mrf.mxu0
      %620 = vmatprep.mubr.bf16.mxu0 0
      %621 = vmatmul.mubr.bf16.gmra.mxu0 %v480
      %v622 = vpop.f32.mrf.mxu0
      %v623 = vadd.f32 0.0, %v622
      %v624 = vpop.f32.mrf.mxu0
      %v625 = vpop.f32.mrf.mxu0
      %v626 = vadd.f32 0.0, %v625
      %v627 = vpop.f32.mrf.mxu0
      %628 = vmatprep.mubr.bf16.mxu0 0
      %629 = vmatmul.mubr.bf16.gmra.mxu0 %v483
      %v630 = vpop.f32.mrf.mxu0
      %v631 = vadd.f32 0.0, %v630
      %v632 = vpop.f32.mrf.mxu0
      %v633 = vpop.f32.mrf.mxu0
      %v634 = vadd.f32 0.0, %v633
      %v635 = vpop.f32.mrf.mxu0
      %636 = vmatprep.mubr.bf16.mxu0 0
      %637 = vmatmul.mubr.bf16.gmra.mxu0 %v486
      %v638 = vpop.f32.mrf.mxu0
      %v639 = vadd.f32 0.0, %v638
      %v640 = vpop.f32.mrf.mxu0
      %v641 = vpop.f32.mrf.mxu0
      %v642 = vadd.f32 0.0, %v641
      %v643 = vpop.f32.mrf.mxu0
      %644 = vmatprep.mubr.bf16.mxu0 0
      %645 = vmatmul.mubr.bf16.gmra.mxu0 %v489
      %v646 = vpop.f32.mrf.mxu0
      %v647 = vadd.f32 0.0, %v646
      %v648 = vpop.f32.mrf.mxu0
      %v649 = vpop.f32.mrf.mxu0
      %v650 = vadd.f32 0.0, %v649
      %v651 = vpop.f32.mrf.mxu0
      %652 = vmatprep.mubr.bf16.mxu0 0
      %653 = vmatmul.mubr.bf16.gmra.mxu0 %v492
      %v654 = vpop.f32.mrf.mxu0
      %v655 = vadd.f32 0.0, %v654
      %v656 = vpop.f32.mrf.mxu0
      %v657 = vpop.f32.mrf.mxu0
      %v658 = vadd.f32 0.0, %v657
      %v659 = vpop.f32.mrf.mxu0
      %660 = vmatprep.mubr.bf16.mxu0 0
      %661 = vmatmul.mubr.bf16.gmra.mxu0 %v495
      %v662 = vpop.f32.mrf.mxu0
      %v663 = vadd.f32 0.0, %v662
      %v664 = vpop.f32.mrf.mxu0
      %v665 = vpop.f32.mrf.mxu0
      %v666 = vadd.f32 0.0, %v665
      %v667 = vpop.f32.mrf.mxu0
      %668 = vmatprep.mubr.bf16.mxu0 0
      %669 = vmatmul.mubr.bf16.gmra.mxu0 %v498
      %v670 = vpop.f32.mrf.mxu0
      %v671 = vadd.f32 0.0, %v670
      %v672 = vpop.f32.mrf.mxu0
      %v673 = vpop.f32.mrf.mxu0
      %v674 = vadd.f32 0.0, %v673
      %v675 = vpop.f32.mrf.mxu0
      %676 = vmatprep.mubr.bf16.mxu0 0
      %677 = vmatmul.mubr.bf16.gmra.mxu0 %v501
      %v678 = vpop.f32.mrf.mxu0
      %v679 = vadd.f32 0.0, %v678
      %v680 = vpop.f32.mrf.mxu0
      %v681 = vpop.f32.mrf.mxu0
      %v682 = vadd.f32 0.0, %v681
      %v683 = vpop.f32.mrf.mxu0
      %684 = vmatprep.mubr.bf16.mxu0 0
      %685 = vmatmul.mubr.bf16.gmra.mxu0 %v504
      %v686 = vpop.f32.mrf.mxu0
      %v687 = vadd.f32 0.0, %v686
      %v688 = vpop.f32.mrf.mxu0
      %v689 = vpop.f32.mrf.mxu0
      %v690 = vadd.f32 0.0, %v689
      %v691 = vpop.f32.mrf.mxu0
      %692 = vmatprep.mubr.bf16.mxu0 0
      %693 = vmatmul.mubr.bf16.gmra.mxu0 %v507
      %v694 = vpop.f32.mrf.mxu0
      %v695 = vadd.f32 0.0, %v694
      %v696 = vpop.f32.mrf.mxu0
      %v697 = vpop.f32.mrf.mxu0
      %v698 = vadd.f32 0.0, %v697
      %v699 = vpop.f32.mrf.mxu0
      %700 = vmatprep.mubr.bf16.mxu0 0
      %701 = vmatmul.mubr.bf16.gmra.mxu0 %v510
      %v702 = vpop.f32.mrf.mxu0
      %v703 = vadd.f32 0.0, %v702
      %v704 = vpop.f32.mrf.mxu0
      %v705 = vpop.f32.mrf.mxu0
      %v706 = vadd.f32 0.0, %v705
      %v707 = vpop.f32.mrf.mxu0
      %708 = vdwg.mxu0
      %v709 = vld [vmem:[%s3] sm:$0x1]
      %v711 = vlaneseq
      %v712 = vshrl.u32 %v711, 7
      %v713 = vsub.s32 0, %v712
      %v714 = vrot.slane %v709, %v713
      %v716 = vmul.f32 %v551, %v714
      %v717 = vmul.f32 %v554, %v714
      %v718 = vmul.f32 %v559, %v714
      %v719 = vmul.f32 %v562, %v714
      %v720 = vmul.f32 %v567, %v714
      %v721 = vmul.f32 %v570, %v714
      %v722 = vmul.f32 %v575, %v714
      %v723 = vmul.f32 %v578, %v714
      %v724 = vmul.f32 %v583, %v714
      %v725 = vmul.f32 %v586, %v714
      %v726 = vmul.f32 %v591, %v714
      %v727 = vmul.f32 %v594, %v714
      %v728 = vmul.f32 %v599, %v714
      %v729 = vmul.f32 %v602, %v714
      %v730 = vmul.f32 %v607, %v714
      %v731 = vmul.f32 %v610, %v714
      %v732 = vmul.f32 %v615, %v714
      %v733 = vmul.f32 %v618, %v714
      %v734 = vmul.f32 %v623, %v714
      %v735 = vmul.f32 %v626, %v714
      %v736 = vmul.f32 %v631, %v714
      %v737 = vmul.f32 %v634, %v714
      %v738 = vmul.f32 %v639, %v714
      %v739 = vmul.f32 %v642, %v714
      %v740 = vmul.f32 %v647, %v714
      %v741 = vmul.f32 %v650, %v714
      %v742 = vmul.f32 %v655, %v714
      %v743 = vmul.f32 %v658, %v714
      %v744 = vmul.f32 %v663, %v714
      %v745 = vmul.f32 %v666, %v714
      %v746 = vmul.f32 %v671, %v714
      %v747 = vmul.f32 %v674, %v714
      %v748 = vmul.f32 %v679, %v714
      %v749 = vmul.f32 %v682, %v714
      %v750 = vmul.f32 %v687, %v714
      %v751 = vmul.f32 %v690, %v714
      %v752 = vmul.f32 %v695, %v714
      %v753 = vmul.f32 %v698, %v714
      %v754 = vmul.f32 %v703, %v714
      %v755 = vmul.f32 %v706, %v714
      %v756 = vld [vmem:[%s4] sm:$0x1]
      %v758 = vlaneseq
      %v759 = vshrl.u32 %v758, 7
      %v760 = vsub.s32 0, %v759
      %v761 = vrot.slane %v756, %v760
      %v763 = vadd.f32 %v716, %v761
      %v764 = vadd.f32 %v717, %v761
      %v765 = vadd.f32 %v718, %v761
      %v766 = vadd.f32 %v719, %v761
      %v767 = vadd.f32 %v720, %v761
      %v768 = vadd.f32 %v721, %v761
      %v769 = vadd.f32 %v722, %v761
      %v770 = vadd.f32 %v723, %v761
      %v771 = vadd.f32 %v724, %v761
      %v772 = vadd.f32 %v725, %v761
      %v773 = vadd.f32 %v726, %v761
      %v774 = vadd.f32 %v727, %v761
      %v775 = vadd.f32 %v728, %v761
      %v776 = vadd.f32 %v729, %v761
      %v777 = vadd.f32 %v730, %v761
      %v778 = vadd.f32 %v731, %v761
      %v779 = vadd.f32 %v732, %v761
      %v780 = vadd.f32 %v733, %v761
      %v781 = vadd.f32 %v734, %v761
      %v782 = vadd.f32 %v735, %v761
      %v783 = vadd.f32 %v736, %v761
      %v784 = vadd.f32 %v737, %v761
      %v785 = vadd.f32 %v738, %v761
      %v786 = vadd.f32 %v739, %v761
      %v787 = vadd.f32 %v740, %v761
      %v788 = vadd.f32 %v741, %v761
      %v789 = vadd.f32 %v742, %v761
      %v790 = vadd.f32 %v743, %v761
      %v791 = vadd.f32 %v744, %v761
      %v792 = vadd.f32 %v745, %v761
      %v793 = vadd.f32 %v746, %v761
      %v794 = vadd.f32 %v747, %v761
      %v795 = vadd.f32 %v748, %v761
      %v796 = vadd.f32 %v749, %v761
      %v797 = vadd.f32 %v750, %v761
      %v798 = vadd.f32 %v751, %v761
      %v799 = vadd.f32 %v752, %v761
      %v800 = vadd.f32 %v753, %v761
      %v801 = vadd.f32 %v754, %v761
      %v802 = vadd.f32 %v755, %v761
      %vm803 = vcmp.gt.f32.partialorder %v763, 0.0
      %vm804 = vcmp.gt.f32.partialorder %v764, 0.0
      %vm805 = vcmp.gt.f32.partialorder %v765, 0.0
      %vm806 = vcmp.gt.f32.partialorder %v766, 0.0
      %vm807 = vcmp.gt.f32.partialorder %v767, 0.0
      %vm808 = vcmp.gt.f32.partialorder %v768, 0.0
      %vm809 = vcmp.gt.f32.partialorder %v769, 0.0
      %vm810 = vcmp.gt.f32.partialorder %v770, 0.0
      %vm811 = vcmp.gt.f32.partialorder %v771, 0.0
      %vm812 = vcmp.gt.f32.partialorder %v772, 0.0
      %vm813 = vcmp.gt.f32.partialorder %v773, 0.0
      %vm814 = vcmp.gt.f32.partialorder %v774, 0.0
      %vm815 = vcmp.gt.f32.partialorder %v775, 0.0
      %vm816 = vcmp.gt.f32.partialorder %v776, 0.0
      %vm817 = vcmp.gt.f32.partialorder %v777, 0.0
      %vm818 = vcmp.gt.f32.partialorder %v778, 0.0
      %vm819 = vcmp.gt.f32.partialorder %v779, 0.0
      %vm820 = vcmp.gt.f32.partialorder %v780, 0.0
      %vm821 = vcmp.gt.f32.partialorder %v781, 0.0
      %vm822 = vcmp.gt.f32.partialorder %v782, 0.0
      %vm823 = vcmp.gt.f32.partialorder %v783, 0.0
      %vm824 = vcmp.gt.f32.partialorder %v784, 0.0
      %vm825 = vcmp.gt.f32.partialorder %v785, 0.0
      %vm826 = vcmp.gt.f32.partialorder %v786, 0.0
      %vm827 = vcmp.gt.f32.partialorder %v787, 0.0
      %vm828 = vcmp.gt.f32.partialorder %v788, 0.0
      %vm829 = vcmp.gt.f32.partialorder %v789, 0.0
      %vm830 = vcmp.gt.f32.partialorder %v790, 0.0
      %vm831 = vcmp.gt.f32.partialorder %v791, 0.0
      %vm832 = vcmp.gt.f32.partialorder %v792, 0.0
      %vm833 = vcmp.gt.f32.partialorder %v793, 0.0
      %vm834 = vcmp.gt.f32.partialorder %v794, 0.0
      %vm835 = vcmp.gt.f32.partialorder %v795, 0.0
      %vm836 = vcmp.gt.f32.partialorder %v796, 0.0
      %vm837 = vcmp.gt.f32.partialorder %v797, 0.0
      %vm838 = vcmp.gt.f32.partialorder %v798, 0.0
      %vm839 = vcmp.gt.f32.partialorder %v799, 0.0
      %vm840 = vcmp.gt.f32.partialorder %v800, 0.0
      %vm841 = vcmp.gt.f32.partialorder %v801, 0.0
      %vm842 = vcmp.gt.f32.partialorder %v802, 0.0
      %v843 = vmul.f32 %v763, 0.01
      %v844 = vmul.f32 %v764, 0.01
      %v845 = vmul.f32 %v765, 0.01
      %v846 = vmul.f32 %v766, 0.01
      %v847 = vmul.f32 %v767, 0.01
      %v848 = vmul.f32 %v768, 0.01
      %v849 = vmul.f32 %v769, 0.01
      %v850 = vmul.f32 %v770, 0.01
      %v851 = vmul.f32 %v771, 0.01
      %v852 = vmul.f32 %v772, 0.01
      %v853 = vmul.f32 %v773, 0.01
      %v854 = vmul.f32 %v774, 0.01
      %v855 = vmul.f32 %v775, 0.01
      %v856 = vmul.f32 %v776, 0.01
      %v857 = vmul.f32 %v777, 0.01
      %v858 = vmul.f32 %v778, 0.01
      %v859 = vmul.f32 %v779, 0.01
      %v860 = vmul.f32 %v780, 0.01
      %v861 = vmul.f32 %v781, 0.01
      %v862 = vmul.f32 %v782, 0.01
      %v863 = vmul.f32 %v783, 0.01
      %v864 = vmul.f32 %v784, 0.01
      %v865 = vmul.f32 %v785, 0.01
      %v866 = vmul.f32 %v786, 0.01
      %v867 = vmul.f32 %v787, 0.01
      %v868 = vmul.f32 %v788, 0.01
      %v869 = vmul.f32 %v789, 0.01
      %v870 = vmul.f32 %v790, 0.01
      %v871 = vmul.f32 %v791, 0.01
      %v872 = vmul.f32 %v792, 0.01
      %v873 = vmul.f32 %v793, 0.01
      %v874 = vmul.f32 %v794, 0.01
      %v875 = vmul.f32 %v795, 0.01
      %v876 = vmul.f32 %v796, 0.01
      %v877 = vmul.f32 %v797, 0.01
      %v878 = vmul.f32 %v798, 0.01
      %v879 = vmul.f32 %v799, 0.01
      %v880 = vmul.f32 %v800, 0.01
      %v881 = vmul.f32 %v801, 0.01
      %v882 = vmul.f32 %v802, 0.01
      %v883 = vsel %vm803, %v763, %v843
      %v884 = vsel %vm804, %v764, %v844
      %v885 = vsel %vm805, %v765, %v845
      %v886 = vsel %vm806, %v766, %v846
      %v887 = vsel %vm807, %v767, %v847
      %v888 = vsel %vm808, %v768, %v848
      %v889 = vsel %vm809, %v769, %v849
      %v890 = vsel %vm810, %v770, %v850
      %v891 = vsel %vm811, %v771, %v851
      %v892 = vsel %vm812, %v772, %v852
      %v893 = vsel %vm813, %v773, %v853
      %v894 = vsel %vm814, %v774, %v854
      %v895 = vsel %vm815, %v775, %v855
      %v896 = vsel %vm816, %v776, %v856
      %v897 = vsel %vm817, %v777, %v857
      %v898 = vsel %vm818, %v778, %v858
      %v899 = vsel %vm819, %v779, %v859
      %v900 = vsel %vm820, %v780, %v860
      %v901 = vsel %vm821, %v781, %v861
      %v902 = vsel %vm822, %v782, %v862
      %v903 = vsel %vm823, %v783, %v863
      %v904 = vsel %vm824, %v784, %v864
      %v905 = vsel %vm825, %v785, %v865
      %v906 = vsel %vm826, %v786, %v866
      %v907 = vsel %vm827, %v787, %v867
      %v908 = vsel %vm828, %v788, %v868
      %v909 = vsel %vm829, %v789, %v869
      %v910 = vsel %vm830, %v790, %v870
      %v911 = vsel %vm831, %v791, %v871
      %v912 = vsel %vm832, %v792, %v872
      %v913 = vsel %vm833, %v793, %v873
      %v914 = vsel %vm834, %v794, %v874
      %v915 = vsel %vm835, %v795, %v875
      %v916 = vsel %vm836, %v796, %v876
      %v917 = vsel %vm837, %v797, %v877
      %v918 = vsel %vm838, %v798, %v878
      %v919 = vsel %vm839, %v799, %v879
      %v920 = vsel %vm840, %v800, %v880
      %v921 = vsel %vm841, %v801, %v881
      %v922 = vsel %vm842, %v802, %v882
      %v923 = vlaneseq
      %v924 = vshrl.u32 %v923, 7
      %v925 = vadd.s32 %v924, 8
      %v926 = vadd.s32 %v924, 16
      %v927 = vadd.s32 %v924, 24
      %vm928 = vcmp.ge.s32.totalorder %v924, 1
      %vm929 = vcmp.ge.s32.totalorder %v925, 1
      %vm930 = vcmp.ge.s32.totalorder %v926, 1
      %vm931 = vcmp.ge.s32.totalorder %v927, 1
      %vm932 = vcmp.le.s32.totalorder %v924, 16
      %vm933 = vcmp.le.s32.totalorder %v925, 16
      %vm934 = vcmp.le.s32.totalorder %v926, 16
      %vm935 = vcmp.le.s32.totalorder %v927, 16
      %vm936 = vmand %vm928, %vm932
      %vm937 = vmand %vm929, %vm933
      %vm938 = vmand %vm930, %vm934
      %vm939 = vmand %vm931, %vm935
      %p940 = scmp.gt.s32.totalorder %s24, 0
      %s941 = scalar_select %p940, 1, 0
      %v942 = vstv %s941
      %vm943 = vcmp.eq.s32.totalorder %v942, 1
      %vm944 = vmand %vm936, %vm943
      %vm945 = vmand %vm937, %vm943
      %vm946 = vmand %vm938, %vm943
      %vm947 = vmand %vm939, %vm943
      %vm948 = vmand %vm936, 1
      %vm949 = vmand %vm937, 1
      %vm950 = vmand %vm938, 1
      %vm951 = vmand %vm939, 1
      %p952 = scmp.lt.s32.totalorder %s24, 1
      %s953 = scalar_select %p952, 1, 0
      %v954 = vstv %s953
      %vm955 = vcmp.eq.s32.totalorder %v954, 1
      %vm956 = vmand %vm944, 1
      %vm957 = vmand %vm945, 1
      %vm958 = vmand %vm946, 1
      %vm959 = vmand %vm947, 1
      %vm960 = vmand %vm948, %vm955
      %vm961 = vmand %vm949, %vm955
      %vm962 = vmand %vm950, %vm955
      %vm963 = vmand %vm951, %vm955
      %v964 = vsel %vm956, %v883, 0.0
      %v965 = vsel %vm957, %v884, 0.0
      %v966 = vsel %vm958, %v885, 0.0
      %v967 = vsel %vm959, %v886, 0.0
      %v968 = vsel %vm948, %v887, 0.0
      %v969 = vsel %vm949, %v888, 0.0
      %v970 = vsel %vm950, %v889, 0.0
      %v971 = vsel %vm951, %v890, 0.0
      %v972 = vsel %vm948, %v891, 0.0
      %v973 = vsel %vm949, %v892, 0.0
      %v974 = vsel %vm950, %v893, 0.0
      %v975 = vsel %vm951, %v894, 0.0
      %v976 = vsel %vm948, %v895, 0.0
      %v977 = vsel %vm949, %v896, 0.0
      %v978 = vsel %vm950, %v897, 0.0
      %v979 = vsel %vm951, %v898, 0.0
      %v980 = vsel %vm948, %v899, 0.0
      %v981 = vsel %vm949, %v900, 0.0
      %v982 = vsel %vm950, %v901, 0.0
      %v983 = vsel %vm951, %v902, 0.0
      %v984 = vsel %vm948, %v903, 0.0
      %v985 = vsel %vm949, %v904, 0.0
      %v986 = vsel %vm950, %v905, 0.0
      %v987 = vsel %vm951, %v906, 0.0
      %v988 = vsel %vm948, %v907, 0.0
      %v989 = vsel %vm949, %v908, 0.0
      %v990 = vsel %vm950, %v909, 0.0
      %v991 = vsel %vm951, %v910, 0.0
      %v992 = vsel %vm948, %v911, 0.0
      %v993 = vsel %vm949, %v912, 0.0
      %v994 = vsel %vm950, %v913, 0.0
      %v995 = vsel %vm951, %v914, 0.0
      %v996 = vsel %vm948, %v915, 0.0
      %v997 = vsel %vm949, %v916, 0.0
      %v998 = vsel %vm950, %v917, 0.0
      %v999 = vsel %vm951, %v918, 0.0
      %v1000 = vsel %vm960, %v919, 0.0
      %v1001 = vsel %vm961, %v920, 0.0
      %v1002 = vsel %vm962, %v921, 0.0
      %v1003 = vsel %vm963, %v922, 0.0
      %vm1004 = vcmask 15360
      %1005 = vst.msk [vmem:[#allocation2] sm:$0xff] %vm1004, %v964
      %1006 = vst.msk [vmem:[#allocation2 + $0x8] sm:$0xff] %vm1004, %v965
      %1007 = vst.msk [vmem:[#allocation2 + $0x10] sm:$0xff] %vm1004, %v966
      %1008 = vst.msk [vmem:[#allocation2 + $0x18] sm:$0xff] %vm1004, %v967
      %1009 = vst.msk [vmem:[#allocation2 + $0x20] sm:$0xff] %vm1004, %v968
      %1010 = vst.msk [vmem:[#allocation2 + $0x28] sm:$0xff] %vm1004, %v969
      %1011 = vst.msk [vmem:[#allocation2 + $0x30] sm:$0xff] %vm1004, %v970
      %1012 = vst.msk [vmem:[#allocation2 + $0x38] sm:$0xff] %vm1004, %v971
      %1013 = vst.msk [vmem:[#allocation2 + $0x40] sm:$0xff] %vm1004, %v972
      %1014 = vst.msk [vmem:[#allocation2 + $0x48] sm:$0xff] %vm1004, %v973
      %1015 = vst.msk [vmem:[#allocation2 + $0x50] sm:$0xff] %vm1004, %v974
      %1016 = vst.msk [vmem:[#allocation2 + $0x58] sm:$0xff] %vm1004, %v975
      %1017 = vst.msk [vmem:[#allocation2 + $0x60] sm:$0xff] %vm1004, %v976
      %1018 = vst.msk [vmem:[#allocation2 + $0x68] sm:$0xff] %vm1004, %v977
      %1019 = vst.msk [vmem:[#allocation2 + $0x70] sm:$0xff] %vm1004, %v978
      %1020 = vst.msk [vmem:[#allocation2 + $0x78] sm:$0xff] %vm1004, %v979
      %1021 = vst.msk [vmem:[#allocation2 + $0x80] sm:$0xff] %vm1004, %v980
      %1022 = vst.msk [vmem:[#allocation2 + $0x88] sm:$0xff] %vm1004, %v981
      %1023 = vst.msk [vmem:[#allocation2 + $0x90] sm:$0xff] %vm1004, %v982
      %1024 = vst.msk [vmem:[#allocation2 + $0x98] sm:$0xff] %vm1004, %v983
      %1025 = vst.msk [vmem:[#allocation2 + $0xa0] sm:$0xff] %vm1004, %v984
      %1026 = vst.msk [vmem:[#allocation2 + $0xa8] sm:$0xff] %vm1004, %v985
      %1027 = vst.msk [vmem:[#allocation2 + $0xb0] sm:$0xff] %vm1004, %v986
      %1028 = vst.msk [vmem:[#allocation2 + $0xb8] sm:$0xff] %vm1004, %v987
      %1029 = vst.msk [vmem:[#allocation2 + $0xc0] sm:$0xff] %vm1004, %v988
      %1030 = vst.msk [vmem:[#allocation2 + $0xc8] sm:$0xff] %vm1004, %v989
      %1031 = vst.msk [vmem:[#allocation2 + $0xd0] sm:$0xff] %vm1004, %v990
      %1032 = vst.msk [vmem:[#allocation2 + $0xd8] sm:$0xff] %vm1004, %v991
      %1033 = vst.msk [vmem:[#allocation2 + $0xe0] sm:$0xff] %vm1004, %v992
      %1034 = vst.msk [vmem:[#allocation2 + $0xe8] sm:$0xff] %vm1004, %v993
      %1035 = vst.msk [vmem:[#allocation2 + $0xf0] sm:$0xff] %vm1004, %v994
      %1036 = vst.msk [vmem:[#allocation2 + $0xf8] sm:$0xff] %vm1004, %v995
      %1037 = vst.msk [vmem:[#allocation2 + $0x100] sm:$0xff] %vm1004, %v996
      %1038 = vst.msk [vmem:[#allocation2 + $0x108] sm:$0xff] %vm1004, %v997
      %1039 = vst.msk [vmem:[#allocation2 + $0x110] sm:$0xff] %vm1004, %v998
      %1040 = vst.msk [vmem:[#allocation2 + $0x118] sm:$0xff] %vm1004, %v999
      %1041 = vst.msk [vmem:[#allocation2 + $0x120] sm:$0xff] %vm1004, %v1000
      %1042 = vst.msk [vmem:[#allocation2 + $0x128] sm:$0xff] %vm1004, %v1001
      %1043 = vst.msk [vmem:[#allocation2 + $0x130] sm:$0xff] %vm1004, %v1002
      %1044 = vst.msk [vmem:[#allocation2 + $0x138] sm:$0xff] %vm1004, %v1003
      %v1045 = vld [vmem:[#allocation2] sm:$0xff]
      %v1046 = vld [vmem:[#allocation2 + $0x8] sm:$0xff]
      %v1047 = vld [vmem:[#allocation2 + $0x20] sm:$0xff]
      %v1048 = vld [vmem:[#allocation2 + $0x28] sm:$0xff]
      %v1049 = vld [vmem:[#allocation2 + $0x40] sm:$0xff]
      %v1050 = vld [vmem:[#allocation2 + $0x48] sm:$0xff]
      %v1051 = vld [vmem:[#allocation2 + $0x60] sm:$0xff]
      %v1052 = vld [vmem:[#allocation2 + $0x68] sm:$0xff]
      %v1053 = vld [vmem:[#allocation2 + $0x80] sm:$0xff]
      %v1054 = vld [vmem:[#allocation2 + $0x88] sm:$0xff]
      %v1055 = vld [vmem:[#allocation2 + $0xa0] sm:$0xff]
      %v1056 = vld [vmem:[#allocation2 + $0xa8] sm:$0xff]
      %v1057 = vld [vmem:[#allocation2 + $0xc0] sm:$0xff]
      %v1058 = vld [vmem:[#allocation2 + $0xc8] sm:$0xff]
      %v1059 = vld [vmem:[#allocation2 + $0xe0] sm:$0xff]
      %v1060 = vld [vmem:[#allocation2 + $0xe8] sm:$0xff]
      %v1061 = vld [vmem:[#allocation2 + $0x1] sm:$0xff]
      %v1062 = vld [vmem:[#allocation2 + $0x9] sm:$0xff]
      %v1063 = vld [vmem:[#allocation2 + $0x21] sm:$0xff]
      %v1064 = vld [vmem:[#allocation2 + $0x29] sm:$0xff]
      %v1065 = vld [vmem:[#allocation2 + $0x41] sm:$0xff]
      %v1066 = vld [vmem:[#allocation2 + $0x49] sm:$0xff]
      %v1067 = vld [vmem:[#allocation2 + $0x61] sm:$0xff]
      %v1068 = vld [vmem:[#allocation2 + $0x69] sm:$0xff]
      %v1069 = vld [vmem:[#allocation2 + $0x81] sm:$0xff]
      %v1070 = vld [vmem:[#allocation2 + $0x89] sm:$0xff]
      %v1071 = vld [vmem:[#allocation2 + $0xa1] sm:$0xff]
      %v1072 = vld [vmem:[#allocation2 + $0xa9] sm:$0xff]
      %v1073 = vld [vmem:[#allocation2 + $0xc1] sm:$0xff]
      %v1074 = vld [vmem:[#allocation2 + $0xc9] sm:$0xff]
      %v1075 = vld [vmem:[#allocation2 + $0xe1] sm:$0xff]
      %v1076 = vld [vmem:[#allocation2 + $0xe9] sm:$0xff]
      %v1077 = vld [vmem:[#allocation2 + $0x2] sm:$0xff]
      %v1078 = vld [vmem:[#allocation2 + $0xa] sm:$0xff]
      %v1079 = vld [vmem:[#allocation2 + $0x22] sm:$0xff]
      %v1080 = vld [vmem:[#allocation2 + $0x2a] sm:$0xff]
      %v1081 = vld [vmem:[#allocation2 + $0x42] sm:$0xff]
      %v1082 = vld [vmem:[#allocation2 + $0x4a] sm:$0xff]
      %v1083 = vld [vmem:[#allocation2 + $0x62] sm:$0xff]
      %v1084 = vld [vmem:[#allocation2 + $0x6a] sm:$0xff]
      %v1085 = vld [vmem:[#allocation2 + $0x82] sm:$0xff]
      %v1086 = vld [vmem:[#allocation2 + $0x8a] sm:$0xff]
      %v1087 = vld [vmem:[#allocation2 + $0xa2] sm:$0xff]
      %v1088 = vld [vmem:[#allocation2 + $0xaa] sm:$0xff]
      %v1089 = vld [vmem:[#allocation2 + $0xc2] sm:$0xff]
      %v1090 = vld [vmem:[#allocation2 + $0xca] sm:$0xff]
      %v1091 = vld [vmem:[#allocation2 + $0xe2] sm:$0xff]
      %v1092 = vld [vmem:[#allocation2 + $0xea] sm:$0xff]
      %s1093 = scalar_lea.vmem [#allocation2], 32
      %v1094 = vld [vmem:[%s1093] sm:$0xff]
      %v1095 = vld [vmem:[%s1093 + $0x8] sm:$0xff]
      %v1096 = vld [vmem:[%s1093 + $0x20] sm:$0xff]
      %v1097 = vld [vmem:[%s1093 + $0x28] sm:$0xff]
      %v1098 = vld [vmem:[%s1093 + $0x40] sm:$0xff]
      %v1099 = vld [vmem:[%s1093 + $0x48] sm:$0xff]
      %v1100 = vld [vmem:[%s1093 + $0x60] sm:$0xff]
      %v1101 = vld [vmem:[%s1093 + $0x68] sm:$0xff]
      %v1102 = vld [vmem:[%s1093 + $0x80] sm:$0xff]
      %v1103 = vld [vmem:[%s1093 + $0x88] sm:$0xff]
      %v1104 = vld [vmem:[%s1093 + $0xa0] sm:$0xff]
      %v1105 = vld [vmem:[%s1093 + $0xa8] sm:$0xff]
      %v1106 = vld [vmem:[%s1093 + $0xc0] sm:$0xff]
      %v1107 = vld [vmem:[%s1093 + $0xc8] sm:$0xff]
      %v1108 = vld [vmem:[%s1093 + $0xe0] sm:$0xff]
      %v1109 = vld [vmem:[%s1093 + $0xe8] sm:$0xff]
      %v1110 = vld [vmem:[%s1093 + $0x1] sm:$0xff]
      %v1111 = vld [vmem:[%s1093 + $0x9] sm:$0xff]
      %v1112 = vld [vmem:[%s1093 + $0x21] sm:$0xff]
      %v1113 = vld [vmem:[%s1093 + $0x29] sm:$0xff]
      %v1114 = vld [vmem:[%s1093 + $0x41] sm:$0xff]
      %v1115 = vld [vmem:[%s1093 + $0x49] sm:$0xff]
      %v1116 = vld [vmem:[%s1093 + $0x61] sm:$0xff]
      %v1117 = vld [vmem:[%s1093 + $0x69] sm:$0xff]
      %v1118 = vld [vmem:[%s1093 + $0x81] sm:$0xff]
      %v1119 = vld [vmem:[%s1093 + $0x89] sm:$0xff]
      %v1120 = vld [vmem:[%s1093 + $0xa1] sm:$0xff]
      %v1121 = vld [vmem:[%s1093 + $0xa9] sm:$0xff]
      %v1122 = vld [vmem:[%s1093 + $0xc1] sm:$0xff]
      %v1123 = vld [vmem:[%s1093 + $0xc9] sm:$0xff]
      %v1124 = vld [vmem:[%s1093 + $0xe1] sm:$0xff]
      %v1125 = vld [vmem:[%s1093 + $0xe9] sm:$0xff]
      %v1126 = vld [vmem:[%s1093 + $0x2] sm:$0xff]
      %v1127 = vld [vmem:[%s1093 + $0xa] sm:$0xff]
      %v1128 = vld [vmem:[%s1093 + $0x22] sm:$0xff]
      %v1129 = vld [vmem:[%s1093 + $0x2a] sm:$0xff]
      %v1130 = vld [vmem:[%s1093 + $0x42] sm:$0xff]
      %v1131 = vld [vmem:[%s1093 + $0x4a] sm:$0xff]
      %v1132 = vld [vmem:[%s1093 + $0x62] sm:$0xff]
      %v1133 = vld [vmem:[%s1093 + $0x6a] sm:$0xff]
      %v1134 = vld [vmem:[%s1093 + $0x82] sm:$0xff]
      %v1135 = vld [vmem:[%s1093 + $0x8a] sm:$0xff]
      %v1136 = vld [vmem:[%s1093 + $0xa2] sm:$0xff]
      %v1137 = vld [vmem:[%s1093 + $0xaa] sm:$0xff]
      %v1138 = vld [vmem:[%s1093 + $0xc2] sm:$0xff]
      %v1139 = vld [vmem:[%s1093 + $0xca] sm:$0xff]
      %v1140 = vld [vmem:[%s1093 + $0xe2] sm:$0xff]
      %v1141 = vld [vmem:[%s1093 + $0xea] sm:$0xff]
      %s1142 = scalar_lea.vmem [#allocation2], 64
      %v1143 = vld [vmem:[%s1142] sm:$0xff]
      %v1144 = vld [vmem:[%s1142 + $0x8] sm:$0xff]
      %v1145 = vld [vmem:[%s1142 + $0x20] sm:$0xff]
      %v1146 = vld [vmem:[%s1142 + $0x28] sm:$0xff]
      %v1147 = vld [vmem:[%s1142 + $0x40] sm:$0xff]
      %v1148 = vld [vmem:[%s1142 + $0x48] sm:$0xff]
      %v1149 = vld [vmem:[%s1142 + $0x60] sm:$0xff]
      %v1150 = vld [vmem:[%s1142 + $0x68] sm:$0xff]
      %v1151 = vld [vmem:[%s1142 + $0x80] sm:$0xff]
      %v1152 = vld [vmem:[%s1142 + $0x88] sm:$0xff]
      %v1153 = vld [vmem:[%s1142 + $0xa0] sm:$0xff]
      %v1154 = vld [vmem:[%s1142 + $0xa8] sm:$0xff]
      %v1155 = vld [vmem:[%s1142 + $0xc0] sm:$0xff]
      %v1156 = vld [vmem:[%s1142 + $0xc8] sm:$0xff]
      %v1157 = vld [vmem:[%s1142 + $0xe0] sm:$0xff]
      %v1158 = vld [vmem:[%s1142 + $0xe8] sm:$0xff]
      %v1159 = vld [vmem:[%s1142 + $0x1] sm:$0xff]
      %v1160 = vld [vmem:[%s1142 + $0x9] sm:$0xff]
      %v1161 = vld [vmem:[%s1142 + $0x21] sm:$0xff]
      %v1162 = vld [vmem:[%s1142 + $0x29] sm:$0xff]
      %v1163 = vld [vmem:[%s1142 + $0x41] sm:$0xff]
      %v1164 = vld [vmem:[%s1142 + $0x49] sm:$0xff]
      %v1165 = vld [vmem:[%s1142 + $0x61] sm:$0xff]
      %v1166 = vld [vmem:[%s1142 + $0x69] sm:$0xff]
      %v1167 = vld [vmem:[%s1142 + $0x81] sm:$0xff]
      %v1168 = vld [vmem:[%s1142 + $0x89] sm:$0xff]
      %v1169 = vld [vmem:[%s1142 + $0xa1] sm:$0xff]
      %v1170 = vld [vmem:[%s1142 + $0xa9] sm:$0xff]
      %v1171 = vld [vmem:[%s1142 + $0xc1] sm:$0xff]
      %v1172 = vld [vmem:[%s1142 + $0xc9] sm:$0xff]
      %v1173 = vld [vmem:[%s1142 + $0xe1] sm:$0xff]
      %v1174 = vld [vmem:[%s1142 + $0xe9] sm:$0xff]
      %v1175 = vld [vmem:[%s1142 + $0x2] sm:$0xff]
      %v1176 = vld [vmem:[%s1142 + $0xa] sm:$0xff]
      %v1177 = vld [vmem:[%s1142 + $0x22] sm:$0xff]
      %v1178 = vld [vmem:[%s1142 + $0x2a] sm:$0xff]
      %v1179 = vld [vmem:[%s1142 + $0x42] sm:$0xff]
      %v1180 = vld [vmem:[%s1142 + $0x4a] sm:$0xff]
      %v1181 = vld [vmem:[%s1142 + $0x62] sm:$0xff]
      %v1182 = vld [vmem:[%s1142 + $0x6a] sm:$0xff]
      %v1183 = vld [vmem:[%s1142 + $0x82] sm:$0xff]
      %v1184 = vld [vmem:[%s1142 + $0x8a] sm:$0xff]
      %v1185 = vld [vmem:[%s1142 + $0xa2] sm:$0xff]
      %v1186 = vld [vmem:[%s1142 + $0xaa] sm:$0xff]
      %v1187 = vld [vmem:[%s1142 + $0xc2] sm:$0xff]
      %v1188 = vld [vmem:[%s1142 + $0xca] sm:$0xff]
      %v1189 = vld [vmem:[%s1142 + $0xe2] sm:$0xff]
      %v1190 = vld [vmem:[%s1142 + $0xea] sm:$0xff]
      %1207 = vrot.lane.b32.xlu0 %v1061, 2
      %v1208 = vpop.permute.xlu0 %1207
      %1209 = vrot.lane.b32.xlu0 %v1062, 2
      %v1210 = vpop.permute.xlu0 %1209
      %1211 = vrot.lane.b32.xlu0 %v1063, 2
      %v1212 = vpop.permute.xlu0 %1211
      %1213 = vrot.lane.b32.xlu0 %v1064, 2
      %v1214 = vpop.permute.xlu0 %1213
      %1215 = vrot.lane.b32.xlu0 %v1065, 2
      %v1216 = vpop.permute.xlu0 %1215
      %1217 = vrot.lane.b32.xlu0 %v1066, 2
      %v1218 = vpop.permute.xlu0 %1217
      %1219 = vrot.lane.b32.xlu0 %v1067, 2
      %v1220 = vpop.permute.xlu0 %1219
      %1221 = vrot.lane.b32.xlu0 %v1068, 2
      %v1222 = vpop.permute.xlu0 %1221
      %1223 = vrot.lane.b32.xlu0 %v1069, 2
      %v1224 = vpop.permute.xlu0 %1223
      %1225 = vrot.lane.b32.xlu0 %v1070, 2
      %v1226 = vpop.permute.xlu0 %1225
      %1227 = vrot.lane.b32.xlu0 %v1071, 2
      %v1228 = vpop.permute.xlu0 %1227
      %1229 = vrot.lane.b32.xlu0 %v1072, 2
      %v1230 = vpop.permute.xlu0 %1229
      %1231 = vrot.lane.b32.xlu0 %v1073, 2
      %v1232 = vpop.permute.xlu0 %1231
      %1233 = vrot.lane.b32.xlu0 %v1074, 2
      %v1234 = vpop.permute.xlu0 %1233
      %1235 = vrot.lane.b32.xlu0 %v1075, 2
      %v1236 = vpop.permute.xlu0 %1235
      %1237 = vrot.lane.b32.xlu0 %v1076, 2
      %v1238 = vpop.permute.xlu0 %1237
      %1271 = vrot.lane.b32.xlu0 %v1077, 4
      %v1272 = vpop.permute.xlu0 %1271
      %1273 = vrot.lane.b32.xlu0 %v1078, 4
      %v1274 = vpop.permute.xlu0 %1273
      %1275 = vrot.lane.b32.xlu0 %v1079, 4
      %v1276 = vpop.permute.xlu0 %1275
      %1277 = vrot.lane.b32.xlu0 %v1080, 4
      %v1278 = vpop.permute.xlu0 %1277
      %1279 = vrot.lane.b32.xlu0 %v1081, 4
      %v1280 = vpop.permute.xlu0 %1279
      %1281 = vrot.lane.b32.xlu0 %v1082, 4
      %v1282 = vpop.permute.xlu0 %1281
      %1283 = vrot.lane.b32.xlu0 %v1083, 4
      %v1284 = vpop.permute.xlu0 %1283
      %1285 = vrot.lane.b32.xlu0 %v1084, 4
      %v1286 = vpop.permute.xlu0 %1285
      %1287 = vrot.lane.b32.xlu0 %v1085, 4
      %v1288 = vpop.permute.xlu0 %1287
      %1289 = vrot.lane.b32.xlu0 %v1086, 4
      %v1290 = vpop.permute.xlu0 %1289
      %1291 = vrot.lane.b32.xlu0 %v1087, 4
      %v1292 = vpop.permute.xlu0 %1291
      %1293 = vrot.lane.b32.xlu0 %v1088, 4
      %v1294 = vpop.permute.xlu0 %1293
      %1295 = vrot.lane.b32.xlu0 %v1089, 4
      %v1296 = vpop.permute.xlu0 %1295
      %1297 = vrot.lane.b32.xlu0 %v1090, 4
      %v1298 = vpop.permute.xlu0 %1297
      %1299 = vrot.lane.b32.xlu0 %v1091, 4
      %v1300 = vpop.permute.xlu0 %1299
      %1301 = vrot.lane.b32.xlu0 %v1092, 4
      %v1302 = vpop.permute.xlu0 %1301
      %1335 = vrot.lane.b32.xlu0 %v1094, 6
      %v1336 = vpop.permute.xlu0 %1335
      %1337 = vrot.lane.b32.xlu0 %v1095, 6
      %v1338 = vpop.permute.xlu0 %1337
      %1339 = vrot.lane.b32.xlu0 %v1096, 6
      %v1340 = vpop.permute.xlu0 %1339
      %1341 = vrot.lane.b32.xlu0 %v1097, 6
      %v1342 = vpop.permute.xlu0 %1341
      %1343 = vrot.lane.b32.xlu0 %v1098, 6
      %v1344 = vpop.permute.xlu0 %1343
      %1345 = vrot.lane.b32.xlu0 %v1099, 6
      %v1346 = vpop.permute.xlu0 %1345
      %1347 = vrot.lane.b32.xlu0 %v1100, 6
      %v1348 = vpop.permute.xlu0 %1347
      %1349 = vrot.lane.b32.xlu0 %v1101, 6
      %v1350 = vpop.permute.xlu0 %1349
      %1351 = vrot.lane.b32.xlu0 %v1102, 6
      %v1352 = vpop.permute.xlu0 %1351
      %1353 = vrot.lane.b32.xlu0 %v1103, 6
      %v1354 = vpop.permute.xlu0 %1353
      %1355 = vrot.lane.b32.xlu0 %v1104, 6
      %v1356 = vpop.permute.xlu0 %1355
      %1357 = vrot.lane.b32.xlu0 %v1105, 6
      %v1358 = vpop.permute.xlu0 %1357
      %1359 = vrot.lane.b32.xlu0 %v1106, 6
      %v1360 = vpop.permute.xlu0 %1359
      %1361 = vrot.lane.b32.xlu0 %v1107, 6
      %v1362 = vpop.permute.xlu0 %1361
      %1363 = vrot.lane.b32.xlu0 %v1108, 6
      %v1364 = vpop.permute.xlu0 %1363
      %1365 = vrot.lane.b32.xlu0 %v1109, 6
      %v1366 = vpop.permute.xlu0 %1365
      %1399 = vrot.lane.b32.xlu0 %v1110, 8
      %v1400 = vpop.permute.xlu0 %1399
      %1401 = vrot.lane.b32.xlu0 %v1111, 8
      %v1402 = vpop.permute.xlu0 %1401
      %1403 = vrot.lane.b32.xlu0 %v1112, 8
      %v1404 = vpop.permute.xlu0 %1403
      %1405 = vrot.lane.b32.xlu0 %v1113, 8
      %v1406 = vpop.permute.xlu0 %1405
      %1407 = vrot.lane.b32.xlu0 %v1114, 8
      %v1408 = vpop.permute.xlu0 %1407
      %1409 = vrot.lane.b32.xlu0 %v1115, 8
      %v1410 = vpop.permute.xlu0 %1409
      %1411 = vrot.lane.b32.xlu0 %v1116, 8
      %v1412 = vpop.permute.xlu0 %1411
      %1413 = vrot.lane.b32.xlu0 %v1117, 8
      %v1414 = vpop.permute.xlu0 %1413
      %1415 = vrot.lane.b32.xlu0 %v1118, 8
      %v1416 = vpop.permute.xlu0 %1415
      %1417 = vrot.lane.b32.xlu0 %v1119, 8
      %v1418 = vpop.permute.xlu0 %1417
      %1419 = vrot.lane.b32.xlu0 %v1120, 8
      %v1420 = vpop.permute.xlu0 %1419
      %1421 = vrot.lane.b32.xlu0 %v1121, 8
      %v1422 = vpop.permute.xlu0 %1421
      %1423 = vrot.lane.b32.xlu0 %v1122, 8
      %v1424 = vpop.permute.xlu0 %1423
      %1425 = vrot.lane.b32.xlu0 %v1123, 8
      %v1426 = vpop.permute.xlu0 %1425
      %1427 = vrot.lane.b32.xlu0 %v1124, 8
      %v1428 = vpop.permute.xlu0 %1427
      %1429 = vrot.lane.b32.xlu0 %v1125, 8
      %v1430 = vpop.permute.xlu0 %1429
      %1463 = vrot.lane.b32.xlu0 %v1126, 10
      %v1464 = vpop.permute.xlu0 %1463
      %1465 = vrot.lane.b32.xlu0 %v1127, 10
      %v1466 = vpop.permute.xlu0 %1465
      %1467 = vrot.lane.b32.xlu0 %v1128, 10
      %v1468 = vpop.permute.xlu0 %1467
      %1469 = vrot.lane.b32.xlu0 %v1129, 10
      %v1470 = vpop.permute.xlu0 %1469
      %1471 = vrot.lane.b32.xlu0 %v1130, 10
      %v1472 = vpop.permute.xlu0 %1471
      %1473 = vrot.lane.b32.xlu0 %v1131, 10
      %v1474 = vpop.permute.xlu0 %1473
      %1475 = vrot.lane.b32.xlu0 %v1132, 10
      %v1476 = vpop.permute.xlu0 %1475
      %1477 = vrot.lane.b32.xlu0 %v1133, 10
      %v1478 = vpop.permute.xlu0 %1477
      %1479 = vrot.lane.b32.xlu0 %v1134, 10
      %v1480 = vpop.permute.xlu0 %1479
      %1481 = vrot.lane.b32.xlu0 %v1135, 10
      %v1482 = vpop.permute.xlu0 %1481
      %1483 = vrot.lane.b32.xlu0 %v1136, 10
      %v1484 = vpop.permute.xlu0 %1483
      %1485 = vrot.lane.b32.xlu0 %v1137, 10
      %v1486 = vpop.permute.xlu0 %1485
      %1487 = vrot.lane.b32.xlu0 %v1138, 10
      %v1488 = vpop.permute.xlu0 %1487
      %1489 = vrot.lane.b32.xlu0 %v1139, 10
      %v1490 = vpop.permute.xlu0 %1489
      %1491 = vrot.lane.b32.xlu0 %v1140, 10
      %v1492 = vpop.permute.xlu0 %1491
      %1493 = vrot.lane.b32.xlu0 %v1141, 10
      %v1494 = vpop.permute.xlu0 %1493
      %1527 = vrot.lane.b32.xlu0 %v1143, 12
      %v1528 = vpop.permute.xlu0 %1527
      %1529 = vrot.lane.b32.xlu0 %v1144, 12
      %v1530 = vpop.permute.xlu0 %1529
      %1531 = vrot.lane.b32.xlu0 %v1145, 12
      %v1532 = vpop.permute.xlu0 %1531
      %1533 = vrot.lane.b32.xlu0 %v1146, 12
      %v1534 = vpop.permute.xlu0 %1533
      %1535 = vrot.lane.b32.xlu0 %v1147, 12
      %v1536 = vpop.permute.xlu0 %1535
      %1537 = vrot.lane.b32.xlu0 %v1148, 12
      %v1538 = vpop.permute.xlu0 %1537
      %1539 = vrot.lane.b32.xlu0 %v1149, 12
      %v1540 = vpop.permute.xlu0 %1539
      %1541 = vrot.lane.b32.xlu0 %v1150, 12
      %v1542 = vpop.permute.xlu0 %1541
      %1543 = vrot.lane.b32.xlu0 %v1151, 12
      %v1544 = vpop.permute.xlu0 %1543
      %1545 = vrot.lane.b32.xlu0 %v1152, 12
      %v1546 = vpop.permute.xlu0 %1545
      %1547 = vrot.lane.b32.xlu0 %v1153, 12
      %v1548 = vpop.permute.xlu0 %1547
      %1549 = vrot.lane.b32.xlu0 %v1154, 12
      %v1550 = vpop.permute.xlu0 %1549
      %1551 = vrot.lane.b32.xlu0 %v1155, 12
      %v1552 = vpop.permute.xlu0 %1551
      %1553 = vrot.lane.b32.xlu0 %v1156, 12
      %v1554 = vpop.permute.xlu0 %1553
      %1555 = vrot.lane.b32.xlu0 %v1157, 12
      %v1556 = vpop.permute.xlu0 %1555
      %1557 = vrot.lane.b32.xlu0 %v1158, 12
      %v1558 = vpop.permute.xlu0 %1557
      %1591 = vrot.lane.b32.xlu0 %v1159, 14
      %v1592 = vpop.permute.xlu0 %1591
      %1593 = vrot.lane.b32.xlu0 %v1160, 14
      %v1594 = vpop.permute.xlu0 %1593
      %1595 = vrot.lane.b32.xlu0 %v1161, 14
      %v1596 = vpop.permute.xlu0 %1595
      %1597 = vrot.lane.b32.xlu0 %v1162, 14
      %v1598 = vpop.permute.xlu0 %1597
      %1599 = vrot.lane.b32.xlu0 %v1163, 14
      %v1600 = vpop.permute.xlu0 %1599
      %1601 = vrot.lane.b32.xlu0 %v1164, 14
      %v1602 = vpop.permute.xlu0 %1601
      %1603 = vrot.lane.b32.xlu0 %v1165, 14
      %v1604 = vpop.permute.xlu0 %1603
      %1605 = vrot.lane.b32.xlu0 %v1166, 14
      %v1606 = vpop.permute.xlu0 %1605
      %1607 = vrot.lane.b32.xlu0 %v1167, 14
      %v1608 = vpop.permute.xlu0 %1607
      %1609 = vrot.lane.b32.xlu0 %v1168, 14
      %v1610 = vpop.permute.xlu0 %1609
      %1611 = vrot.lane.b32.xlu0 %v1169, 14
      %v1612 = vpop.permute.xlu0 %1611
      %1613 = vrot.lane.b32.xlu0 %v1170, 14
      %v1614 = vpop.permute.xlu0 %1613
      %1615 = vrot.lane.b32.xlu0 %v1171, 14
      %v1616 = vpop.permute.xlu0 %1615
      %1617 = vrot.lane.b32.xlu0 %v1172, 14
      %v1618 = vpop.permute.xlu0 %1617
      %1619 = vrot.lane.b32.xlu0 %v1173, 14
      %v1620 = vpop.permute.xlu0 %1619
      %1621 = vrot.lane.b32.xlu0 %v1174, 14
      %v1622 = vpop.permute.xlu0 %1621
      %1655 = vrot.lane.b32.xlu0 %v1175, 16
      %v1656 = vpop.permute.xlu0 %1655
      %1657 = vrot.lane.b32.xlu0 %v1176, 16
      %v1658 = vpop.permute.xlu0 %1657
      %1659 = vrot.lane.b32.xlu0 %v1177, 16
      %v1660 = vpop.permute.xlu0 %1659
      %1661 = vrot.lane.b32.xlu0 %v1178, 16
      %v1662 = vpop.permute.xlu0 %1661
      %1663 = vrot.lane.b32.xlu0 %v1179, 16
      %v1664 = vpop.permute.xlu0 %1663
      %1665 = vrot.lane.b32.xlu0 %v1180, 16
      %v1666 = vpop.permute.xlu0 %1665
      %1667 = vrot.lane.b32.xlu0 %v1181, 16
      %v1668 = vpop.permute.xlu0 %1667
      %1669 = vrot.lane.b32.xlu0 %v1182, 16
      %v1670 = vpop.permute.xlu0 %1669
      %1671 = vrot.lane.b32.xlu0 %v1183, 16
      %v1672 = vpop.permute.xlu0 %1671
      %1673 = vrot.lane.b32.xlu0 %v1184, 16
      %v1674 = vpop.permute.xlu0 %1673
      %1675 = vrot.lane.b32.xlu0 %v1185, 16
      %v1676 = vpop.permute.xlu0 %1675
      %1677 = vrot.lane.b32.xlu0 %v1186, 16
      %v1678 = vpop.permute.xlu0 %1677
      %1679 = vrot.lane.b32.xlu0 %v1187, 16
      %v1680 = vpop.permute.xlu0 %1679
      %1681 = vrot.lane.b32.xlu0 %v1188, 16
      %v1682 = vpop.permute.xlu0 %1681
      %1683 = vrot.lane.b32.xlu0 %v1189, 16
      %v1684 = vpop.permute.xlu0 %1683
      %1685 = vrot.lane.b32.xlu0 %v1190, 16
      %v1686 = vpop.permute.xlu0 %1685
      %v1703 = vsel %vm1004, %v1045, %v1208
      %v1704 = vsel %vm1004, %v1046, %v1210
      %v1705 = vsel %vm1004, %v1047, %v1212
      %v1706 = vsel %vm1004, %v1048, %v1214
      %v1707 = vsel %vm1004, %v1049, %v1216
      %v1708 = vsel %vm1004, %v1050, %v1218
      %v1709 = vsel %vm1004, %v1051, %v1220
      %v1710 = vsel %vm1004, %v1052, %v1222
      %v1711 = vsel %vm1004, %v1053, %v1224
      %v1712 = vsel %vm1004, %v1054, %v1226
      %v1713 = vsel %vm1004, %v1055, %v1228
      %v1714 = vsel %vm1004, %v1056, %v1230
      %v1715 = vsel %vm1004, %v1057, %v1232
      %v1716 = vsel %vm1004, %v1058, %v1234
      %v1717 = vsel %vm1004, %v1059, %v1236
      %v1718 = vsel %vm1004, %v1060, %v1238
      %v1719 = vsel %vm451, %v1703, %v1272
      %v1720 = vsel %vm451, %v1704, %v1274
      %v1721 = vsel %vm451, %v1705, %v1276
      %v1722 = vsel %vm451, %v1706, %v1278
      %v1723 = vsel %vm451, %v1707, %v1280
      %v1724 = vsel %vm451, %v1708, %v1282
      %v1725 = vsel %vm451, %v1709, %v1284
      %v1726 = vsel %vm451, %v1710, %v1286
      %v1727 = vsel %vm451, %v1711, %v1288
      %v1728 = vsel %vm451, %v1712, %v1290
      %v1729 = vsel %vm451, %v1713, %v1292
      %v1730 = vsel %vm451, %v1714, %v1294
      %v1731 = vsel %vm451, %v1715, %v1296
      %v1732 = vsel %vm451, %v1716, %v1298
      %v1733 = vsel %vm451, %v1717, %v1300
      %v1734 = vsel %vm451, %v1718, %v1302
      %vm1735 = vcmask 48128
      %v1736 = vsel %vm1735, %v1719, %v1336
      %v1737 = vsel %vm1735, %v1720, %v1338
      %v1738 = vsel %vm1735, %v1721, %v1340
      %v1739 = vsel %vm1735, %v1722, %v1342
      %v1740 = vsel %vm1735, %v1723, %v1344
      %v1741 = vsel %vm1735, %v1724, %v1346
      %v1742 = vsel %vm1735, %v1725, %v1348
      %v1743 = vsel %vm1735, %v1726, %v1350
      %v1744 = vsel %vm1735, %v1727, %v1352
      %v1745 = vsel %vm1735, %v1728, %v1354
      %v1746 = vsel %vm1735, %v1729, %v1356
      %v1747 = vsel %vm1735, %v1730, %v1358
      %v1748 = vsel %vm1735, %v1731, %v1360
      %v1749 = vsel %vm1735, %v1732, %v1362
      %v1750 = vsel %vm1735, %v1733, %v1364
      %v1751 = vsel %vm1735, %v1734, %v1366
      %vm1752 = vcmask 64512
      %v1753 = vsel %vm1752, %v1736, %v1400
      %v1754 = vsel %vm1752, %v1737, %v1402
      %v1755 = vsel %vm1752, %v1738, %v1404
      %v1756 = vsel %vm1752, %v1739, %v1406
      %v1757 = vsel %vm1752, %v1740, %v1408
      %v1758 = vsel %vm1752, %v1741, %v1410
      %v1759 = vsel %vm1752, %v1742, %v1412
      %v1760 = vsel %vm1752, %v1743, %v1414
      %v1761 = vsel %vm1752, %v1744, %v1416
      %v1762 = vsel %vm1752, %v1745, %v1418
      %v1763 = vsel %vm1752, %v1746, %v1420
      %v1764 = vsel %vm1752, %v1747, %v1422
      %v1765 = vsel %vm1752, %v1748, %v1424
      %v1766 = vsel %vm1752, %v1749, %v1426
      %v1767 = vsel %vm1752, %v1750, %v1428
      %v1768 = vsel %vm1752, %v1751, %v1430
      %vm1769 = vcmask 80896
      %v1770 = vsel %vm1769, %v1753, %v1464
      %v1771 = vsel %vm1769, %v1754, %v1466
      %v1772 = vsel %vm1769, %v1755, %v1468
      %v1773 = vsel %vm1769, %v1756, %v1470
      %v1774 = vsel %vm1769, %v1757, %v1472
      %v1775 = vsel %vm1769, %v1758, %v1474
      %v1776 = vsel %vm1769, %v1759, %v1476
      %v1777 = vsel %vm1769, %v1760, %v1478
      %v1778 = vsel %vm1769, %v1761, %v1480
      %v1779 = vsel %vm1769, %v1762, %v1482
      %v1780 = vsel %vm1769, %v1763, %v1484
      %v1781 = vsel %vm1769, %v1764, %v1486
      %v1782 = vsel %vm1769, %v1765, %v1488
      %v1783 = vsel %vm1769, %v1766, %v1490
      %v1784 = vsel %vm1769, %v1767, %v1492
      %v1785 = vsel %vm1769, %v1768, %v1494
      %vm1786 = vcmask 97280
      %v1787 = vsel %vm1786, %v1770, %v1528
      %v1788 = vsel %vm1786, %v1771, %v1530
      %v1789 = vsel %vm1786, %v1772, %v1532
      %v1790 = vsel %vm1786, %v1773, %v1534
      %v1791 = vsel %vm1786, %v1774, %v1536
      %v1792 = vsel %vm1786, %v1775, %v1538
      %v1793 = vsel %vm1786, %v1776, %v1540
      %v1794 = vsel %vm1786, %v1777, %v1542
      %v1795 = vsel %vm1786, %v1778, %v1544
      %v1796 = vsel %vm1786, %v1779, %v1546
      %v1797 = vsel %vm1786, %v1780, %v1548
      %v1798 = vsel %vm1786, %v1781, %v1550
      %v1799 = vsel %vm1786, %v1782, %v1552
      %v1800 = vsel %vm1786, %v1783, %v1554
      %v1801 = vsel %vm1786, %v1784, %v1556
      %v1802 = vsel %vm1786, %v1785, %v1558
      %vm1803 = vcmask 113664
      %v1804 = vsel %vm1803, %v1787, %v1592
      %v1805 = vsel %vm1803, %v1788, %v1594
      %v1806 = vsel %vm1803, %v1789, %v1596
      %v1807 = vsel %vm1803, %v1790, %v1598
      %v1808 = vsel %vm1803, %v1791, %v1600
      %v1809 = vsel %vm1803, %v1792, %v1602
      %v1810 = vsel %vm1803, %v1793, %v1604
      %v1811 = vsel %vm1803, %v1794, %v1606
      %v1812 = vsel %vm1803, %v1795, %v1608
      %v1813 = vsel %vm1803, %v1796, %v1610
      %v1814 = vsel %vm1803, %v1797, %v1612
      %v1815 = vsel %vm1803, %v1798, %v1614
      %v1816 = vsel %vm1803, %v1799, %v1616
      %v1817 = vsel %vm1803, %v1800, %v1618
      %v1818 = vsel %vm1803, %v1801, %v1620
      %v1819 = vsel %vm1803, %v1802, %v1622
      %vm1820 = vcmask 130048
      %v1821 = vsel %vm1820, %v1804, %v1656
      %v1822 = vsel %vm1820, %v1805, %v1658
      %v1823 = vsel %vm1820, %v1806, %v1660
      %v1824 = vsel %vm1820, %v1807, %v1662
      %v1825 = vsel %vm1820, %v1808, %v1664
      %v1826 = vsel %vm1820, %v1809, %v1666
      %v1827 = vsel %vm1820, %v1810, %v1668
      %v1828 = vsel %vm1820, %v1811, %v1670
      %v1829 = vsel %vm1820, %v1812, %v1672
      %v1830 = vsel %vm1820, %v1813, %v1674
      %v1831 = vsel %vm1820, %v1814, %v1676
      %v1832 = vsel %vm1820, %v1815, %v1678
      %v1833 = vsel %vm1820, %v1816, %v1680
      %v1834 = vsel %vm1820, %v1817, %v1682
      %v1835 = vsel %vm1820, %v1818, %v1684
      %v1836 = vsel %vm1820, %v1819, %v1686
      %v1837 = vpack.c.bf16 %v1822, %v1821
      %v1838 = vpack.c.bf16 %v1824, %v1823
      %v1839 = vpack.c.bf16 %v1826, %v1825
      %v1840 = vpack.c.bf16 %v1828, %v1827
      %v1841 = vpack.c.bf16 %v1830, %v1829
      %v1842 = vpack.c.bf16 %v1832, %v1831
      %v1843 = vpack.c.bf16 %v1834, %v1833
      %v1844 = vpack.c.bf16 %v1836, %v1835
      %v1845 = vld [vmem:[%s5] sm:$0xf]
      %v1846 = vld [vmem:[%s5 + $0x4] sm:$0xf]
      %v1847 = vld [vmem:[%s5 + $0x8] sm:$0x1]
      %v1851 = vunpack.c.l.b16 %v1845
      %v1852 = vunpack.c.l.b16 %v1846
      %v1853 = vunpack.c.l.b16 %v1847
      %v1854 = vpack.c.b16 %v1852, %v1851
      %v1855 = vpack.c.b16 %v1853, %v1853
      %vm1857 = vcmask 146432
      %v1859 = vsel %vm1857, %v1837, 0
      %v1862 = vsel %vm1857, %v1838, 0
      %v1865 = vsel %vm1857, %v1839, 0
      %v1868 = vsel %vm1857, %v1840, 0
      %v1871 = vsel %vm1857, %v1841, 0
      %v1874 = vsel %vm1857, %v1842, 0
      %v1877 = vsel %vm1857, %v1843, 0
      %v1880 = vsel %vm1857, %v1844, 0
      %vm1882 = vcmask 1040384
      %v1884 = vsel %vm1882, %v1855, 0
      %1886 = vmatprep.subr.bf16.mxu0 0
      %1887 = vmatpush1.bf16.msra.mxu0 0
      %1888 = vmatprep.subr.bf16.mxu0 0
      %1889 = vmatpush1.bf16.msra.mxu0 0
      %1890 = vmatprep.subr.bf16.mxu0 0
      %1891 = vmatpush1.bf16.msra.mxu0 0
      %1892 = vmatprep.subr.bf16.mxu0 0
      %1893 = vmatpush1.bf16.msra.mxu0 0
      %1894 = vmatprep.subr.bf16.mxu0 0
      %1895 = vmatpush1.bf16.msra.mxu0 0
      %1896 = vmatprep.subr.bf16.mxu0 0
      %1897 = vmatpush1.bf16.msra.mxu0 0
      %1898 = vmatprep.subr.bf16.mxu0 0
      %1899 = vmatpush1.bf16.msra.mxu0 %v1884
      %1900 = vmatprep.subr.bf16.mxu0 0
      %1901 = vmatpush1.bf16.msra.mxu0 %v1854
      %1902 = vmatprep.subr.bf16.mxu0 0
      %1903 = vmatpush2.bf16.msra.mxu0 0
      %1904 = vmatprep.subr.bf16.mxu0 0
      %1905 = vmatpush2.bf16.msra.mxu0 0
      %1906 = vmatprep.subr.bf16.mxu0 0
      %1907 = vmatpush2.bf16.msra.mxu0 0
      %1908 = vmatprep.subr.bf16.mxu0 0
      %1909 = vmatpush2.bf16.msra.mxu0 0
      %1910 = vmatprep.subr.bf16.mxu0 0
      %1911 = vmatpush2.bf16.msra.mxu0 0
      %1912 = vmatprep.subr.bf16.mxu0 0
      %1913 = vmatpush2.bf16.msra.mxu0 0
      %1914 = vmatprep.subr.bf16.mxu0 0
      %1915 = vmatpush2.bf16.msra.mxu0 0
      %1916 = vmatprep.subr.bf16.mxu0 0
      %1917 = vmatpush2.bf16.msra.mxu0 0
      %1918 = vmatprep.mubr.bf16.mxu0 0
      %1919 = vmatmul.mubr.bf16.gmra.mxu0 %v1859
      %v1920 = vpop.f32.mrf.mxu0
      %v1921 = vadd.f32 0.0, %v1920
      %v1922 = vpop.f32.mrf.mxu0
      %v1923 = vpop.f32.mrf.mxu0
      %v1924 = vadd.f32 0.0, %v1923
      %v1925 = vpop.f32.mrf.mxu0
      %1926 = vmatprep.mubr.bf16.mxu0 0
      %1927 = vmatmul.mubr.bf16.gmra.mxu0 %v1862
      %v1928 = vpop.f32.mrf.mxu0
      %v1929 = vadd.f32 0.0, %v1928
      %v1930 = vpop.f32.mrf.mxu0
      %v1931 = vpop.f32.mrf.mxu0
      %v1932 = vadd.f32 0.0, %v1931
      %v1933 = vpop.f32.mrf.mxu0
      %1934 = vmatprep.mubr.bf16.mxu0 0
      %1935 = vmatmul.mubr.bf16.gmra.mxu0 %v1865
      %v1936 = vpop.f32.mrf.mxu0
      %v1937 = vadd.f32 0.0, %v1936
      %v1938 = vpop.f32.mrf.mxu0
      %v1939 = vpop.f32.mrf.mxu0
      %v1940 = vadd.f32 0.0, %v1939
      %v1941 = vpop.f32.mrf.mxu0
      %1942 = vmatprep.mubr.bf16.mxu0 0
      %1943 = vmatmul.mubr.bf16.gmra.mxu0 %v1868
      %v1944 = vpop.f32.mrf.mxu0
      %v1945 = vadd.f32 0.0, %v1944
      %v1946 = vpop.f32.mrf.mxu0
      %v1947 = vpop.f32.mrf.mxu0
      %v1948 = vadd.f32 0.0, %v1947
      %v1949 = vpop.f32.mrf.mxu0
      %1950 = vmatprep.mubr.bf16.mxu0 0
      %1951 = vmatmul.mubr.bf16.gmra.mxu0 %v1871
      %v1952 = vpop.f32.mrf.mxu0
      %v1953 = vadd.f32 0.0, %v1952
      %v1954 = vpop.f32.mrf.mxu0
      %v1955 = vpop.f32.mrf.mxu0
      %v1956 = vadd.f32 0.0, %v1955
      %v1957 = vpop.f32.mrf.mxu0
      %1958 = vmatprep.mubr.bf16.mxu0 0
      %1959 = vmatmul.mubr.bf16.gmra.mxu0 %v1874
      %v1960 = vpop.f32.mrf.mxu0
      %v1961 = vadd.f32 0.0, %v1960
      %v1962 = vpop.f32.mrf.mxu0
      %v1963 = vpop.f32.mrf.mxu0
      %v1964 = vadd.f32 0.0, %v1963
      %v1965 = vpop.f32.mrf.mxu0
      %1966 = vmatprep.mubr.bf16.mxu0 0
      %1967 = vmatmul.mubr.bf16.gmra.mxu0 %v1877
      %v1968 = vpop.f32.mrf.mxu0
      %v1969 = vadd.f32 0.0, %v1968
      %v1970 = vpop.f32.mrf.mxu0
      %v1971 = vpop.f32.mrf.mxu0
      %v1972 = vadd.f32 0.0, %v1971
      %v1973 = vpop.f32.mrf.mxu0
      %1974 = vmatprep.mubr.bf16.mxu0 0
      %1975 = vmatmul.mubr.bf16.gmra.mxu0 %v1880
      %v1976 = vpop.f32.mrf.mxu0
      %v1977 = vadd.f32 0.0, %v1976
      %v1978 = vpop.f32.mrf.mxu0
      %v1979 = vpop.f32.mrf.mxu0
      %v1980 = vadd.f32 0.0, %v1979
      %v1981 = vpop.f32.mrf.mxu0
      %1982 = vdwg.mxu0
      %v1983 = vld [vmem:[%s6] sm:$0x1]
      %v1985 = vlaneseq
      %v1986 = vshrl.u32 %v1985, 7
      %v1987 = vsub.s32 0, %v1986
      %v1988 = vrot.slane %v1983, %v1987
      %v1990 = vmul.f32 %v1921, %v1988
      %v1991 = vmul.f32 %v1924, %v1988
      %v1992 = vmul.f32 %v1929, %v1988
      %v1993 = vmul.f32 %v1932, %v1988
      %v1994 = vmul.f32 %v1937, %v1988
      %v1995 = vmul.f32 %v1940, %v1988
      %v1996 = vmul.f32 %v1945, %v1988
      %v1997 = vmul.f32 %v1948, %v1988
      %v1998 = vmul.f32 %v1953, %v1988
      %v1999 = vmul.f32 %v1956, %v1988
      %v2000 = vmul.f32 %v1961, %v1988
      %v2001 = vmul.f32 %v1964, %v1988
      %v2002 = vmul.f32 %v1969, %v1988
      %v2003 = vmul.f32 %v1972, %v1988
      %v2004 = vmul.f32 %v1977, %v1988
      %v2005 = vmul.f32 %v1980, %v1988
      %v2006 = vld [vmem:[%s7] sm:$0x1]
      %v2008 = vlaneseq
      %v2009 = vshrl.u32 %v2008, 7
      %v2010 = vsub.s32 0, %v2009
      %v2011 = vrot.slane %v2006, %v2010
      %v2013 = vadd.f32 %v1990, %v2011
      %v2014 = vadd.f32 %v1991, %v2011
      %v2015 = vadd.f32 %v1992, %v2011
      %v2016 = vadd.f32 %v1993, %v2011
      %v2017 = vadd.f32 %v1994, %v2011
      %v2018 = vadd.f32 %v1995, %v2011
      %v2019 = vadd.f32 %v1996, %v2011
      %v2020 = vadd.f32 %v1997, %v2011
      %v2021 = vadd.f32 %v1998, %v2011
      %v2022 = vadd.f32 %v1999, %v2011
      %v2023 = vadd.f32 %v2000, %v2011
      %v2024 = vadd.f32 %v2001, %v2011
      %v2025 = vadd.f32 %v2002, %v2011
      %v2026 = vadd.f32 %v2003, %v2011
      %v2027 = vadd.f32 %v2004, %v2011
      %v2028 = vadd.f32 %v2005, %v2011
      %vm2029 = vcmp.gt.f32.partialorder %v2013, 0.0
      %vm2030 = vcmp.gt.f32.partialorder %v2014, 0.0
      %vm2031 = vcmp.gt.f32.partialorder %v2015, 0.0
      %vm2032 = vcmp.gt.f32.partialorder %v2016, 0.0
      %vm2033 = vcmp.gt.f32.partialorder %v2017, 0.0
      %vm2034 = vcmp.gt.f32.partialorder %v2018, 0.0
      %vm2035 = vcmp.gt.f32.partialorder %v2019, 0.0
      %vm2036 = vcmp.gt.f32.partialorder %v2020, 0.0
      %vm2037 = vcmp.gt.f32.partialorder %v2021, 0.0
      %vm2038 = vcmp.gt.f32.partialorder %v2022, 0.0
      %vm2039 = vcmp.gt.f32.partialorder %v2023, 0.0
      %vm2040 = vcmp.gt.f32.partialorder %v2024, 0.0
      %vm2041 = vcmp.gt.f32.partialorder %v2025, 0.0
      %vm2042 = vcmp.gt.f32.partialorder %v2026, 0.0
      %vm2043 = vcmp.gt.f32.partialorder %v2027, 0.0
      %vm2044 = vcmp.gt.f32.partialorder %v2028, 0.0
      %v2045 = vmul.f32 %v2013, 0.01
      %v2046 = vmul.f32 %v2014, 0.01
      %v2047 = vmul.f32 %v2015, 0.01
      %v2048 = vmul.f32 %v2016, 0.01
      %v2049 = vmul.f32 %v2017, 0.01
      %v2050 = vmul.f32 %v2018, 0.01
      %v2051 = vmul.f32 %v2019, 0.01
      %v2052 = vmul.f32 %v2020, 0.01
      %v2053 = vmul.f32 %v2021, 0.01
      %v2054 = vmul.f32 %v2022, 0.01
      %v2055 = vmul.f32 %v2023, 0.01
      %v2056 = vmul.f32 %v2024, 0.01
      %v2057 = vmul.f32 %v2025, 0.01
      %v2058 = vmul.f32 %v2026, 0.01
      %v2059 = vmul.f32 %v2027, 0.01
      %v2060 = vmul.f32 %v2028, 0.01
      %v2061 = vsel %vm2029, %v2013, %v2045
      %v2062 = vsel %vm2030, %v2014, %v2046
      %v2063 = vsel %vm2031, %v2015, %v2047
      %v2064 = vsel %vm2032, %v2016, %v2048
      %v2065 = vsel %vm2033, %v2017, %v2049
      %v2066 = vsel %vm2034, %v2018, %v2050
      %v2067 = vsel %vm2035, %v2019, %v2051
      %v2068 = vsel %vm2036, %v2020, %v2052
      %v2069 = vsel %vm2037, %v2021, %v2053
      %v2070 = vsel %vm2038, %v2022, %v2054
      %v2071 = vsel %vm2039, %v2023, %v2055
      %v2072 = vsel %vm2040, %v2024, %v2056
      %v2073 = vsel %vm2041, %v2025, %v2057
      %v2074 = vsel %vm2042, %v2026, %v2058
      %v2075 = vsel %vm2043, %v2027, %v2059
      %v2076 = vsel %vm2044, %v2028, %v2060
      %v2077 = vld [vmem:[%s365 + $0x1] sm:$0xff]
      %v2078 = vld [vmem:[%s365 + $0x9] sm:$0xff]
      %v2079 = vld [vmem:[%s365 + $0x21] sm:$0xff]
      %v2080 = vld [vmem:[%s365 + $0x29] sm:$0xff]
      %v2081 = vld [vmem:[%s365 + $0x41] sm:$0xff]
      %v2082 = vld [vmem:[%s365 + $0x49] sm:$0xff]
      %v2083 = vld [vmem:[%s365 + $0x61] sm:$0xff]
      %v2084 = vld [vmem:[%s365 + $0x69] sm:$0xff]
      %v2085 = vld [vmem:[%s365 + $0x81] sm:$0xff]
      %v2086 = vld [vmem:[%s365 + $0x89] sm:$0xff]
      %v2087 = vld [vmem:[%s365 + $0xa1] sm:$0xff]
      %v2088 = vld [vmem:[%s365 + $0xa9] sm:$0xff]
      %v2089 = vld [vmem:[%s365 + $0xc1] sm:$0xff]
      %v2090 = vld [vmem:[%s365 + $0xc9] sm:$0xff]
      %v2091 = vld [vmem:[%s365 + $0xe1] sm:$0xff]
      %v2092 = vld [vmem:[%s365 + $0xe9] sm:$0xff]
      %v2093 = vadd.f32 %v2061, %v2077
      %v2094 = vadd.f32 %v2062, %v2078
      %v2095 = vadd.f32 %v2063, %v2079
      %v2096 = vadd.f32 %v2064, %v2080
      %v2097 = vadd.f32 %v2065, %v2081
      %v2098 = vadd.f32 %v2066, %v2082
      %v2099 = vadd.f32 %v2067, %v2083
      %v2100 = vadd.f32 %v2068, %v2084
      %v2101 = vadd.f32 %v2069, %v2085
      %v2102 = vadd.f32 %v2070, %v2086
      %v2103 = vadd.f32 %v2071, %v2087
      %v2104 = vadd.f32 %v2072, %v2088
      %v2105 = vadd.f32 %v2073, %v2089
      %v2106 = vadd.f32 %v2074, %v2090
      %v2107 = vadd.f32 %v2075, %v2091
      %v2108 = vadd.f32 %v2076, %v2092
      %2109 = vst.msk [vmem:[%s387] sm:$0xff] %vm451, %v2093
      %2110 = vst.msk [vmem:[%s387 + $0x8] sm:$0xff] %vm451, %v2094
      %2111 = vst.msk [vmem:[%s387 + $0x10] sm:$0xff] %vm451, %v2095
      %2112 = vst.msk [vmem:[%s387 + $0x18] sm:$0xff] %vm451, %v2096
      %2113 = vst.msk [vmem:[%s387 + $0x20] sm:$0xff] %vm451, %v2097
      %2114 = vst.msk [vmem:[%s387 + $0x28] sm:$0xff] %vm451, %v2098
      %2115 = vst.msk [vmem:[%s387 + $0x30] sm:$0xff] %vm451, %v2099
      %2116 = vst.msk [vmem:[%s387 + $0x38] sm:$0xff] %vm451, %v2100
      %2117 = vst.msk [vmem:[%s387 + $0x40] sm:$0xff] %vm451, %v2101
      %2118 = vst.msk [vmem:[%s387 + $0x48] sm:$0xff] %vm451, %v2102
      %2119 = vst.msk [vmem:[%s387 + $0x50] sm:$0xff] %vm451, %v2103
      %2120 = vst.msk [vmem:[%s387 + $0x58] sm:$0xff] %vm451, %v2104
      %2121 = vst.msk [vmem:[%s387 + $0x60] sm:$0xff] %vm451, %v2105
      %2122 = vst.msk [vmem:[%s387 + $0x68] sm:$0xff] %vm451, %v2106
      %2123 = vst.msk [vmem:[%s387 + $0x70] sm:$0xff] %vm451, %v2107
      %2124 = vst.msk [vmem:[%s387 + $0x78] sm:$0xff] %vm451, %v2108
      %s2125 = smul.u32 8, %s24
      %p2126 = scmp.lt.s32.totalorder %s23, 1
      %s2127 = scalar_select %p2126, %s23, 1
      %p2128 = scmp.lt.s32.totalorder %s2125, 15
      %s2129 = scalar_select %p2128, %s2125, 15
      %s2130 = smul.addr %s2129, 2
      %s2131 = smul.addr %s2127, 32
      %s2132 = sadd.s32 %s2130, %s2131
      %s2133 = smul.addr %s2132, 8
      %s2134 = scalar_lea.vmem %s8, %s2133
      // Predicated region
      $region53: #{tpu_custom_call.1} parent=51 // pred_check
        %p2135 = pneg %p233
      $region54: #{tpu_custom_call.1} parent=51 // pred_check_branch
        %2137 = sbr.rel (%p2135) target = $region56
      $region55: #{tpu_custom_call.1} parent=51 // pred_region
        %s2138 = smul.u32 8, %s24
      $region56: #{tpu_custom_call.1} parent=51 // pred_fallthru
        _
    $region52: #{tpu_custom_call.1} parent=5 // pred_fallthru
      _
    %p2139 = scmp.le.s32.totalorder 2, %s14
    // Predicated region
    $region57: #{tpu_custom_call.1} parent=5 // pred_check
      %p2140 = pneg %p2139
    $region58: #{tpu_custom_call.1} parent=5 // pred_check_branch
      %2142 = sbr.rel (%p2140) target = $region60
    $region59: #{tpu_custom_call.1} parent=5 // pred_region
      %s2143 = ssub.s32 %s14, 2
      // Predicated region
      $region61: #{tpu_custom_call.1} parent=59 // pred_check
        %p2144 = pneg %p239
      $region62: #{tpu_custom_call.1} parent=59 // pred_check_branch
        %2146 = sbr.rel (%p2144) target = $region64
      $region63: #{tpu_custom_call.1} parent=59 // pred_region
        %s2147 = smul.u32 8, %s26
        %p2148 = scmp.lt.s32.totalorder %s25, 1
        %s2149 = scalar_select %p2148, %s25, 1
        %p2150 = scmp.lt.s32.totalorder %s2147, 15
        %s2151 = scalar_select %p2150, %s2147, 15
        %s2152 = smul.addr %s2151, 2
        %s2153 = smul.addr %s2149, 32
        %s2154 = sadd.s32 %s2152, %s2153
        %s2155 = smul.addr %s2154, 8
        %s2156 = scalar_lea.vmem %s8, %s2155
      $region64: #{tpu_custom_call.1} parent=59 // pred_fallthru
        _
    $region60: #{tpu_custom_call.1} parent=5 // pred_fallthru
      _
  $region6: #{tpu_custom_call.1} parent=0 // loop_footer
    %s18 = sadd.s32 1, %s14
  $region7: #{tpu_custom_call.1} parent=0 // loop_footer_branch
    %13 = sbr.rel target = $region3
  $region8: #{tpu_custom_call.1} parent=0 // loop_exit
    _

</llo_original>
